<compile_context>
chip_gen: v7x
topology: tpu7x:2x2x1
jax: 0.10.0
libtpu: 0.0.40
codegen_flags: <defaults>
</compile_context>

<pallas_src>
from functools import partial

import jax
import jax.numpy as jnp
from jax import lax
from jax.experimental import pallas as pl
from jax.experimental.pallas import tpu as pltpu


def aux_kernel(x_ref, w1_ref, shift_ref, w2_ref, b2_ref, o_ref):
    """One grid step == one image.

    x_ref     : (1, H+2, Cpad)           bf16  padded NHWC image, (W, Cin) flattened into lanes,
                                               lane dim zero-padded from (W+2)*Cin to Cpad (128-mult)
    w1_ref    : (KH, Cpad, W*Cinter)     bf16  banded 3x3-conv weight, BN scale folded in
    shift_ref : (1, W*Cinter)            f32   folded-BN shift (tiled over W)
    w2_ref    : (W*Cinter, W*Cout)       bf16  block-diagonal 1x1-conv weight (lane-dense out)
    b2_ref    : (1, W*Cout)              f32   1x1-conv bias (tiled over W)
    o_ref     : (1, H, W*Cout)           f32
    """
    kh = w1_ref.shape[0]          # 3
    h_out = o_ref.shape[1]        # H

    x = x_ref[0]                  # (H+2, Cpad), one full-lane (unmasked) load

    # 3x3 conv: accumulate KH row-shifted [H, Cpad] @ [Cpad, W*Cinter] matmuls (MXU).
    # The dx taps are folded into the banded weight, so no im2col / reshape is needed.
    acc = jnp.dot(x[0:h_out, :], w1_ref[0], preferred_element_type=jnp.float32)
    for dy in range(1, kh):
        acc += jnp.dot(x[dy:dy + h_out, :], w1_ref[dy],
                       preferred_element_type=jnp.float32)

    # Folded-BN shift + ReLU epilogue in f32 (VPU).
    hid = jnp.maximum(acc + shift_ref[...], 0.0)

    # Dropout(p=0.1) is identity in eval mode.
    # TODO(synk): training-mode dropout would mask via pltpu.prng_seed / pltpu.prng_random_bits.

    # 1x1 conv as a single lane-dense matmul: result row width = W*Cout = 128 (unmasked stores).
    y = jnp.dot(hid.astype(jnp.bfloat16), w2_ref[...],
                preferred_element_type=jnp.float32)
    o_ref[0] = y + b2_ref[...]


@partial(jax.jit, static_argnames=("eps",))
def aux_layer_pallas(x_nchw, w_conv1, bn_gamma, bn_beta, bn_mean, bn_var,
                     w_conv2, b_conv2, eps=1e-5):
    N, Cin, H, W = x_nchw.shape
    Cinter = w_conv1.shape[0]
    Cout = w_conv2.shape[0]
    KH, KW = w_conv1.shape[2], w_conv1.shape[3]        # 3, 3
    Wp = W + KW - 1                                    # padded width (padding=1 each side)
    Craw = Wp * Cin                                    # 72
    Cpad = ((Craw + 127) // 128) * 128                 # lane-aligned contraction dim (128)

    # ---- fold BatchNorm: scale into conv1 weights, keep the additive shift ----
    inv_std = lax.rsqrt(bn_var.astype(jnp.float32) + eps)
    scale = bn_gamma * inv_std                                        # (Cinter,)
    shift = bn_beta - bn_mean * scale                                 # (Cinter,)
    w1 = jnp.transpose(w_conv1, (2, 3, 1, 0)) * scale                 # (KH, KW, Cin, Cinter)

    # ---- banded (Toeplitz-over-W) stage-1 weight, one band per kh tap -------
    # w1t[kh, p*Cin + ci, w*Cinter + co] = w1[kh, p - w, ci, co]  (0 <= p-w < KW, else 0)
    eyes = jnp.stack([jnp.eye(Wp, W, k=-dx, dtype=w1.dtype) for dx in range(KW)])  # (KW, Wp, W)
    w1t = jnp.einsum('xpw,yxcf->ypcwf', eyes, w1)                     # (KH, Wp, Cin, W, Cinter)
    w1t = w1t.reshape(KH, Craw, W * Cinter)
    w1t = jnp.pad(w1t, ((0, 0), (0, Cpad - Craw), (0, 0))).astype(jnp.bfloat16)   # (KH, Cpad, W*Cinter)
    shift_t = jnp.tile(shift, W).reshape(1, W * Cinter).astype(jnp.float32)

    # ---- block-diagonal 1x1-conv weight so the output is produced lane-dense ----
    # w2b[v*Cinter + ci, w*Cout + co] = w2[ci, co] * (v == w)
    w2 = jnp.transpose(w_conv2.reshape(Cout, Cinter), (1, 0))          # (Cinter, Cout)
    w2b = jnp.einsum('vw,cf->vcwf', jnp.eye(W, dtype=w2.dtype), w2)
    w2b = w2b.reshape(W * Cinter, W * Cout).astype(jnp.bfloat16)
    b2_t = jnp.tile(b_conv2, W).reshape(1, W * Cout).astype(jnp.float32)

    # ---- activations: NCHW -> padded NHWC, (W, Cin) flattened into the lane dim, lane-padded ----
    x = jnp.transpose(x_nchw, (0, 2, 3, 1))                            # (N, H, W, Cin)
    xp = jnp.pad(x, ((0, 0), (1, 1), (1, 1), (0, 0)))                  # (N, H+2, Wp, Cin)
    x2d = xp.reshape(N, H + 2, Craw)
    x2d = jnp.pad(x2d, ((0, 0), (0, 0), (0, Cpad - Craw))).astype(jnp.bfloat16)   # (N, H+2, Cpad)

    # One grid step per image: no M % tm constraint; "parallel" steps -> both v7x TensorCores.
    # Weight/bias blocks use a constant index map, so they stay VMEM-resident across steps.
    # (For much larger H, tile rows with a 2-row halo instead; the banded weights are unchanged.)
    out3 = pl.pallas_call(
        aux_kernel,
        out_shape=jax.ShapeDtypeStruct((N, H, W * Cout), jnp.float32),
        grid_spec=pltpu.PrefetchScalarGridSpec(
            num_scalar_prefetch=0,
            grid=(N,),
            in_specs=[
                pl.BlockSpec((1, H + 2, Cpad), lambda n: (n, 0, 0)),            # padded image n
                pl.BlockSpec((KH, Cpad, W * Cinter), lambda n: (0, 0, 0)),      # banded conv1 w
                pl.BlockSpec((1, W * Cinter), lambda n: (0, 0)),                # BN shift (tiled)
                pl.BlockSpec((W * Cinter, W * Cout), lambda n: (0, 0)),         # block-diag conv2 w
                pl.BlockSpec((1, W * Cout), lambda n: (0, 0)),                  # conv2 bias (tiled)
            ],
            out_specs=pl.BlockSpec((1, H, W * Cout), lambda n: (n, 0, 0)),      # lane-dense (128)
        ),
        compiler_params=pltpu.CompilerParams(dimension_semantics=("parallel",)),
    )(x2d, w1t, shift_t, w2b, b2_t)

    out = out3.reshape(N, H, W, Cout)
    return jnp.transpose(out, (0, 3, 1, 2))                            # back to NCHW


def aux_layer_ref(x_nchw, w_conv1, bn_gamma, bn_beta, bn_mean, bn_var,
                  w_conv2, b_conv2, eps=1e-5):
    dn = ('NCHW', 'OIHW', 'NCHW')
    h = lax.conv_general_dilated(x_nchw, w_conv1, (1, 1), [(1, 1), (1, 1)],
                                 dimension_numbers=dn)
    h = (h - bn_mean[None, :, None, None]) / jnp.sqrt(bn_var[None, :, None, None] + eps)
    h = h * bn_gamma[None, :, None, None] + bn_beta[None, :, None, None]
    h = jnp.maximum(h, 0.0)
    y = lax.conv_general_dilated(h, w_conv2, (1, 1), [(0, 0), (0, 0)],
                                 dimension_numbers=dn)
    return y + b_conv2[None, :, None, None]


if __name__ == "__main__":
    # shapes: in_channels=4, inter_channels=32, out_channels=8, batch=2, spatial=16
    N, Cin, H, W = 2, 4, 16, 16
    Cinter, Cout = 32, 8

    key = jax.random.PRNGKey(0)
    k = jax.random.split(key, 7)
    x = jax.random.normal(k[0], (N, Cin, H, W), dtype=jnp.float32)
    w_conv1 = 0.1 * jax.random.normal(k[1], (Cinter, Cin, 3, 3), dtype=jnp.float32)
    bn_gamma = 1.0 + 0.1 * jax.random.normal(k[2], (Cinter,), dtype=jnp.float32)
    bn_beta = 0.1 * jax.random.normal(k[3], (Cinter,), dtype=jnp.float32)
    bn_mean = 0.1 * jax.random.normal(k[4], (Cinter,), dtype=jnp.float32)
    bn_var = jnp.abs(jax.random.normal(k[5], (Cinter,), dtype=jnp.float32)) + 0.5
    w_conv2 = 0.1 * jax.random.normal(k[6], (Cout, Cinter, 1, 1), dtype=jnp.float32)
    b_conv2 = jnp.linspace(-0.1, 0.1, Cout, dtype=jnp.float32)

    out = aux_layer_pallas(x, w_conv1, bn_gamma, bn_beta, bn_mean, bn_var, w_conv2, b_conv2)
    out = jax.block_until_ready(out)

    ref = aux_layer_ref(x, w_conv1, bn_gamma, bn_beta, bn_mean, bn_var, w_conv2, b_conv2)
    assert out.shape == (N, Cout, H, W)
    # bf16 matmul operands (f32 accumulation) => compare against the f32 reference with a
    # bf16-appropriate tolerance.
    assert jnp.allclose(out, ref, atol=2e-2, rtol=2e-2), (
        f"mismatch vs JAX reference, max abs diff = {float(jnp.max(jnp.abs(out - ref)))}")

    print("KERNEL_OK")
</pallas_src>

<mosaic_0001>
module attributes {stable_mosaic.version = 11 : i64} {
  func.func @aux_kernel(%arg0: i32, %arg1: memref<1x18x128xbf16, #tpu.memory_space<vmem>>, %arg2: memref<3x128x512xbf16, #tpu.memory_space<vmem>>, %arg3: memref<1x512xf32, #tpu.memory_space<vmem>>, %arg4: memref<512x128xbf16, #tpu.memory_space<vmem>>, %arg5: memref<1x128xf32, #tpu.memory_space<vmem>>, %arg6: memref<1x16x128xf32, #tpu.memory_space<vmem>>) attributes {dimension_semantics = [#tpu.dimension_semantics<parallel>], iteration_bounds = array<i64: 2>, scalar_prefetch = 0 : i64, scratch_operands = 0 : i64, tpu.core_type = #tpu.core_type<tc>, window_params = [{transform_indices = @transform_0, window_bounds = array<i64: 1, 18, 128>}, {pipeline_mode = #tpu.pipeline_mode<synchronous>, transform_indices = @transform_1, window_bounds = array<i64: 3, 128, 512>}, {pipeline_mode = #tpu.pipeline_mode<synchronous>, transform_indices = @transform_2, window_bounds = array<i64: 1, 512>}, {pipeline_mode = #tpu.pipeline_mode<synchronous>, transform_indices = @transform_3, window_bounds = array<i64: 512, 128>}, {pipeline_mode = #tpu.pipeline_mode<synchronous>, transform_indices = @transform_4, window_bounds = array<i64: 1, 128>}, {transform_indices = @transform_5, window_bounds = array<i64: 1, 16, 128>}]} {
    %c0 = arith.constant 0 : index
    %c0_0 = arith.constant 0 : index
    %c0_1 = arith.constant 0 : index
    %0 = vector.load %arg1[%c0, %c0_0, %c0_1] : memref<1x18x128xbf16, #tpu.memory_space<vmem>>, vector<1x18x128xbf16>
    %1 = vector.shape_cast %0 : vector<1x18x128xbf16> to vector<18x128xbf16>
    %2 = vector.extract_strided_slice %1 {offsets = [0, 0], sizes = [16, 128], strides = [1, 1]} : vector<18x128xbf16> to vector<16x128xbf16>
    %c0_2 = arith.constant 0 : index
    %c0_3 = arith.constant 0 : index
    %c0_4 = arith.constant 0 : index
    %3 = vector.load %arg2[%c0_2, %c0_3, %c0_4] : memref<3x128x512xbf16, #tpu.memory_space<vmem>>, vector<1x128x512xbf16>
    %4 = vector.shape_cast %3 : vector<1x128x512xbf16> to vector<128x512xbf16>
    %cst = arith.constant dense<0.000000e+00> : vector<16x512xf32>
    %5 = tpu.matmul %2, %4, %cst {dimension_numbers = #tpu.dot_dimension_numbers<[1], [0], [0], [1], [0, 0, 1, 1], [], []>} : vector<16x128xbf16>, vector<128x512xbf16>, vector<16x512xf32> -> vector<16x512xf32>
    %6 = vector.extract_strided_slice %1 {offsets = [1, 0], sizes = [16, 128], strides = [1, 1]} : vector<18x128xbf16> to vector<16x128xbf16>
    %c1 = arith.constant 1 : index
    %c0_5 = arith.constant 0 : index
    %c0_6 = arith.constant 0 : index
    %7 = vector.load %arg2[%c1, %c0_5, %c0_6] : memref<3x128x512xbf16, #tpu.memory_space<vmem>>, vector<1x128x512xbf16>
    %8 = vector.shape_cast %7 : vector<1x128x512xbf16> to vector<128x512xbf16>
    %cst_7 = arith.constant dense<0.000000e+00> : vector<16x512xf32>
    %9 = tpu.matmul %6, %8, %cst_7 {dimension_numbers = #tpu.dot_dimension_numbers<[1], [0], [0], [1], [0, 0, 1, 1], [], []>} : vector<16x128xbf16>, vector<128x512xbf16>, vector<16x512xf32> -> vector<16x512xf32>
    %10 = arith.addf %5, %9 : vector<16x512xf32>
    %11 = vector.extract_strided_slice %1 {offsets = [2, 0], sizes = [16, 128], strides = [1, 1]} : vector<18x128xbf16> to vector<16x128xbf16>
    %c2 = arith.constant 2 : index
    %c0_8 = arith.constant 0 : index
    %c0_9 = arith.constant 0 : index
    %12 = vector.load %arg2[%c2, %c0_8, %c0_9] : memref<3x128x512xbf16, #tpu.memory_space<vmem>>, vector<1x128x512xbf16>
    %13 = vector.shape_cast %12 : vector<1x128x512xbf16> to vector<128x512xbf16>
    %cst_10 = arith.constant dense<0.000000e+00> : vector<16x512xf32>
    %14 = tpu.matmul %11, %13, %cst_10 {dimension_numbers = #tpu.dot_dimension_numbers<[1], [0], [0], [1], [0, 0, 1, 1], [], []>} : vector<16x128xbf16>, vector<128x512xbf16>, vector<16x512xf32> -> vector<16x512xf32>
    %15 = arith.addf %10, %14 : vector<16x512xf32>
    %c0_11 = arith.constant 0 : index
    %c0_12 = arith.constant 0 : index
    %16 = vector.load %arg3[%c0_11, %c0_12] : memref<1x512xf32, #tpu.memory_space<vmem>>, vector<1x512xf32>
    %17 = vector.broadcast %16 : vector<1x512xf32> to vector<16x512xf32>
    %18 = arith.addf %15, %17 : vector<16x512xf32>
    %cst_13 = arith.constant 0.000000e+00 : f32
    %19 = vector.broadcast %cst_13 : f32 to vector<16x512xf32>
    %20 = arith.maximumf %18, %19 : vector<16x512xf32>
    %21 = arith.truncf %20 : vector<16x512xf32> to vector<16x512xbf16>
    %c0_14 = arith.constant 0 : index
    %c0_15 = arith.constant 0 : index
    %22 = vector.load %arg4[%c0_14, %c0_15] : memref<512x128xbf16, #tpu.memory_space<vmem>>, vector<512x128xbf16>
    %cst_16 = arith.constant dense<0.000000e+00> : vector<16x128xf32>
    %23 = tpu.matmul %21, %22, %cst_16 {dimension_numbers = #tpu.dot_dimension_numbers<[1], [0], [0], [1], [0, 0, 1, 1], [], []>} : vector<16x512xbf16>, vector<512x128xbf16>, vector<16x128xf32> -> vector<16x128xf32>
    %c0_17 = arith.constant 0 : index
    %c0_18 = arith.constant 0 : index
    %24 = vector.load %arg5[%c0_17, %c0_18] : memref<1x128xf32, #tpu.memory_space<vmem>>, vector<1x128xf32>
    %25 = vector.broadcast %24 : vector<1x128xf32> to vector<16x128xf32>
    %26 = arith.addf %23, %25 : vector<16x128xf32>
    %c0_19 = arith.constant 0 : index
    %c0_20 = arith.constant 0 : index
    %c0_21 = arith.constant 0 : index
    %27 = vector.load %arg6[%c0_19, %c0_20, %c0_21] : memref<1x16x128xf32, #tpu.memory_space<vmem>>, vector<1x16x128xf32>
    %28 = vector.shape_cast %27 : vector<1x16x128xf32> to vector<16x128xf32>
    %29 = vector.shape_cast %26 : vector<16x128xf32> to vector<1x16x128xf32>
    tpu.vector_store %arg6[%c0_19, %c0_20, %c0_21], %29 {strides = array<i32>} : memref<1x16x128xf32, #tpu.memory_space<vmem>>, vector<1x16x128xf32>,
    return
  }
  func.func @transform_0(%arg0: i32) -> (i32, i32, i32) {
    %c0_i32 = arith.constant 0 : i32
    %c0_i32_0 = arith.constant 0 : i32
    %c0_i32_1 = arith.constant 0 : i32
    return %arg0, %c0_i32, %c0_i32_0 : i32, i32, i32
  }
  func.func @transform_1(%arg0: i32) -> (i32, i32, i32) {
    %c0_i32 = arith.constant 0 : i32
    %c0_i32_0 = arith.constant 0 : i32
    %c0_i32_1 = arith.constant 0 : i32
    %c0_i32_2 = arith.constant 0 : i32
    return %c0_i32, %c0_i32_0, %c0_i32_1 : i32, i32, i32
  }
  func.func @transform_2(%arg0: i32) -> (i32, i32) {
    %c0_i32 = arith.constant 0 : i32
    %c0_i32_0 = arith.constant 0 : i32
    %c0_i32_1 = arith.constant 0 : i32
    return %c0_i32, %c0_i32_0 : i32, i32
  }
  func.func @transform_3(%arg0: i32) -> (i32, i32) {
    %c0_i32 = arith.constant 0 : i32
    %c0_i32_0 = arith.constant 0 : i32
    %c0_i32_1 = arith.constant 0 : i32
    return %c0_i32, %c0_i32_0 : i32, i32
  }
  func.func @transform_4(%arg0: i32) -> (i32, i32) {
    %c0_i32 = arith.constant 0 : i32
    %c0_i32_0 = arith.constant 0 : i32
    %c0_i32_1 = arith.constant 0 : i32
    return %c0_i32, %c0_i32_0 : i32, i32
  }
  func.func @transform_5(%arg0: i32) -> (i32, i32, i32) {
    %c0_i32 = arith.constant 0 : i32
    %c0_i32_0 = arith.constant 0 : i32
    %c0_i32_1 = arith.constant 0 : i32
    return %arg0, %c0_i32, %c0_i32_0 : i32, i32, i32
  }
}

</mosaic_0001>

<llo_original>
// kernel: tile.13
$region0: #{tile.13}
  #allocation0 [shape = 's32[1]{0}', space=sflag, size = 0x4, scoped, tag = 'scoped memory for tile.13']
  %s0 = inlined_call_operand.vmem [shape: f32[32], index: 0, kind: input, shape index: {}]
  %s1 = inlined_call_operand.vmem [shape: f32[16,32], index: 1, kind: output, shape index: {}]
  // Predicated region
  $region2: #{tile.13} parent=0 // pred_check
    _
  $region3: #{tile.13} parent=0 // pred_check_branch
    %3 = sbr.rel (0) target = $region5
  $region4: #{tile.13} parent=0 // pred_region
    _
  $region5: #{tile.13} parent=0 // pred_fallthru
    _
  %v4 = vld [vmem:[%s0] ss:$0 sm:$0xff]
  %5 = vst [vmem:[%s1] sm:$0xff] %v4
  %s6 = scalar_lea.vmem %s1, 8
  %7 = vst [vmem:[%s6] sm:$0xff] %v4

// kernel: tile.14
$region0: #{tile.14}
  %s0 = inlined_call_operand.vmem [shape: f32[16,32], index: 0, kind: input, shape index: {}]
  %s1 = inlined_call_operand.vmem [shape: f32[1,512], index: 1, kind: output, shape index: {}]
  $region1: #{tile.14} parent=0
    #allocation0 [shape = 'u8[16384]{0}', space=vmem, size = 0x4000, scoped, tag = 'scoped mem for output reshape']
    %v2 = vld [vmem:[%s0] ss:$4 sm:$0xf]
    %vm3 = vcmask 261120
    %4 = vst.msk [vmem:[#allocation0] ss:$8 sm:$0xf] %vm3, %v2
    %s5 = scalar_lea.vmem %s0, 3
    %v6 = vld [vmem:[%s5] ss:$4 sm:$0xf]
    %7 = vrot.lane.b32.xlu0 %v6, 96
    %v8 = vpop.permute.xlu0 %7
    %vm9 = vcmask 1048320
    %10 = vst.msk [vmem:[#allocation0] ss:$8 sm:$0xf] %vm9, %v8
    %s11 = scalar_lea.vmem %s0, 2
    %v12 = vld [vmem:[%s11] ss:$4 sm:$0xf]
    %13 = vrot.lane.b32.xlu0 %v12, 64
    %v14 = vpop.permute.xlu0 %13
    %vm15 = vcmask 785920
    %16 = vst.msk [vmem:[#allocation0] ss:$8 sm:$0xf] %vm15, %v14
    %s17 = scalar_lea.vmem %s0, 1
    %v18 = vld [vmem:[%s17] ss:$4 sm:$0xf]
    %19 = vrot.lane.b32.xlu0 %v18, 32
    %v20 = vpop.permute.xlu0 %19
    %vm21 = vcmask 523520
    %22 = vst.msk [vmem:[#allocation0] ss:$8 sm:$0xf] %vm21, %v20
    %s24 = sshllo.u32 0, 1
    %v26 = vld [vmem:[#allocation0] sm:%s24]
    %s27 = sshllo.u32 0, 1
    %28 = vst [vmem:[%s1] sm:%s27] %v26
    %s29 = scalar_lea.vmem [#allocation0], 8
    %v30 = vld [vmem:[%s29] sm:%s24]
    %s31 = sshllo.u32 0, 1
    %s32 = scalar_lea.vmem %s1, 1
    %33 = vst [vmem:[%s32] sm:%s31] %v30
    %s34 = scalar_lea.vmem [#allocation0], 16
    %v35 = vld [vmem:[%s34] sm:%s24]
    %s36 = sshllo.u32 0, 1
    %s37 = smul.addr 1, 2
    %s38 = scalar_lea.vmem %s1, %s37
    %39 = vst [vmem:[%s38] sm:%s36] %v35
    %s40 = scalar_lea.vmem [#allocation0], 24
    %v41 = vld [vmem:[%s40] sm:%s24]
    %s42 = sshllo.u32 0, 1
    %s43 = smul.addr 1, 3
    %s44 = scalar_lea.vmem %s1, %s43
    %45 = vst [vmem:[%s44] sm:%s42] %v41

// kernel: tile.18
$region0: #{tile.18}
  #allocation0 [shape = 's32[1]{0}', space=sflag, size = 0x4, scoped, tag = 'scoped memory for tile.18']
  %s0 = inlined_call_operand.vmem [shape: f32[8], index: 0, kind: input, shape index: {}]
  %s1 = inlined_call_operand.vmem [shape: f32[16,8], index: 1, kind: output, shape index: {}]
  // Predicated region
  $region2: #{tile.18} parent=0 // pred_check
    _
  $region3: #{tile.18} parent=0 // pred_check_branch
    %3 = sbr.rel (0) target = $region5
  $region4: #{tile.18} parent=0 // pred_region
    _
  $region5: #{tile.18} parent=0 // pred_fallthru
    _
  %v4 = vld [vmem:[%s0] ss:$0 sm:$0xff]
  %5 = vst [vmem:[%s1] sm:$0xff] %v4
  %s6 = scalar_lea.vmem %s1, 8
  %7 = vst [vmem:[%s6] sm:$0xff] %v4

// kernel: tile.19
$region0: #{tile.19}
  %s0 = inlined_call_operand.vmem [shape: f32[16,8], index: 0, kind: input, shape index: {}]
  %s1 = inlined_call_operand.vmem [shape: f32[1,128], index: 1, kind: output, shape index: {}]
  $region1: #{tile.19} parent=0
    #allocation0 [shape = 'u8[4096]{0}', space=vmem, size = 0x1000, scoped, tag = 'scoped mem for output reshape']
    %v2 = vld [vmem:[%s0] sm:$0x1]
    %vm3 = vcmask 64512
    %4 = vst.msk [vmem:[#allocation0] sm:$0x1] %vm3, %v2
    %s5 = scalar_lea.vmem %s0, 15
    %v6 = vld [vmem:[%s5] sm:$0x1]
    %7 = vrot.lane.b32.xlu0 %v6, 120
    %v8 = vpop.permute.xlu0 %7
    %vm9 = vcmask 1048512
    %10 = vst.msk [vmem:[#allocation0] sm:$0x1] %vm9, %v8
    %s11 = scalar_lea.vmem %s0, 14
    %v12 = vld [vmem:[%s11] sm:$0x1]
    %13 = vrot.lane.b32.xlu0 %v12, 112
    %v14 = vpop.permute.xlu0 %13
    %vm15 = vcmask 982912
    %16 = vst.msk [vmem:[#allocation0] sm:$0x1] %vm15, %v14
    %s17 = scalar_lea.vmem %s0, 13
    %v18 = vld [vmem:[%s17] sm:$0x1]
    %19 = vrot.lane.b32.xlu0 %v18, 104
    %v20 = vpop.permute.xlu0 %19
    %vm21 = vcmask 917312
    %22 = vst.msk [vmem:[#allocation0] sm:$0x1] %vm21, %v20
    %s23 = scalar_lea.vmem %s0, 12
    %v24 = vld [vmem:[%s23] sm:$0x1]
    %25 = vrot.lane.b32.xlu0 %v24, 96
    %v26 = vpop.permute.xlu0 %25
    %vm27 = vcmask 851712
    %28 = vst.msk [vmem:[#allocation0] sm:$0x1] %vm27, %v26
    %s29 = scalar_lea.vmem %s0, 11
    %v30 = vld [vmem:[%s29] sm:$0x1]
    %31 = vrot.lane.b32.xlu0 %v30, 88
    %v32 = vpop.permute.xlu0 %31
    %vm33 = vcmask 786112
    %34 = vst.msk [vmem:[#allocation0] sm:$0x1] %vm33, %v32
    %s35 = scalar_lea.vmem %s0, 10
    %v36 = vld [vmem:[%s35] sm:$0x1]
    %37 = vrot.lane.b32.xlu0 %v36, 80
    %v38 = vpop.permute.xlu0 %37
    %vm39 = vcmask 720512
    %40 = vst.msk [vmem:[#allocation0] sm:$0x1] %vm39, %v38
    %s41 = scalar_lea.vmem %s0, 9
    %v42 = vld [vmem:[%s41] sm:$0x1]
    %43 = vrot.lane.b32.xlu0 %v42, 72
    %v44 = vpop.permute.xlu0 %43
    %vm45 = vcmask 654912
    %46 = vst.msk [vmem:[#allocation0] sm:$0x1] %vm45, %v44
    %s47 = scalar_lea.vmem %s0, 8
    %v48 = vld [vmem:[%s47] sm:$0x1]
    %49 = vrot.lane.b32.xlu0 %v48, 64
    %v50 = vpop.permute.xlu0 %49
    %vm51 = vcmask 589312
    %52 = vst.msk [vmem:[#allocation0] sm:$0x1] %vm51, %v50
    %s53 = scalar_lea.vmem %s0, 7
    %v54 = vld [vmem:[%s53] sm:$0x1]
    %55 = vrot.lane.b32.xlu0 %v54, 56
    %v56 = vpop.permute.xlu0 %55
    %vm57 = vcmask 523712
    %58 = vst.msk [vmem:[#allocation0] sm:$0x1] %vm57, %v56
    %s59 = scalar_lea.vmem %s0, 6
    %v60 = vld [vmem:[%s59] sm:$0x1]
    %61 = vrot.lane.b32.xlu0 %v60, 48
    %v62 = vpop.permute.xlu0 %61
    %vm63 = vcmask 458112
    %64 = vst.msk [vmem:[#allocation0] sm:$0x1] %vm63, %v62
    %s65 = scalar_lea.vmem %s0, 5
    %v66 = vld [vmem:[%s65] sm:$0x1]
    %67 = vrot.lane.b32.xlu0 %v66, 40
    %v68 = vpop.permute.xlu0 %67
    %vm69 = vcmask 392512
    %70 = vst.msk [vmem:[#allocation0] sm:$0x1] %vm69, %v68
    %s71 = scalar_lea.vmem %s0, 4
    %v72 = vld [vmem:[%s71] sm:$0x1]
    %73 = vrot.lane.b32.xlu0 %v72, 32
    %v74 = vpop.permute.xlu0 %73
    %vm75 = vcmask 326912
    %76 = vst.msk [vmem:[#allocation0] sm:$0x1] %vm75, %v74
    %s77 = scalar_lea.vmem %s0, 3
    %v78 = vld [vmem:[%s77] sm:$0x1]
    %79 = vrot.lane.b32.xlu0 %v78, 24
    %v80 = vpop.permute.xlu0 %79
    %vm81 = vcmask 261312
    %82 = vst.msk [vmem:[#allocation0] sm:$0x1] %vm81, %v80
    %s83 = scalar_lea.vmem %s0, 2
    %v84 = vld [vmem:[%s83] sm:$0x1]
    %85 = vrot.lane.b32.xlu0 %v84, 16
    %v86 = vpop.permute.xlu0 %85
    %vm87 = vcmask 195712
    %88 = vst.msk [vmem:[#allocation0] sm:$0x1] %vm87, %v86
    %s89 = scalar_lea.vmem %s0, 1
    %v90 = vld [vmem:[%s89] sm:$0x1]
    %91 = vrot.lane.b32.xlu0 %v90, 8
    %v92 = vpop.permute.xlu0 %91
    %vm93 = vcmask 130112
    %94 = vst.msk [vmem:[#allocation0] sm:$0x1] %vm93, %v92
    %s96 = sshllo.u32 0, 1
    %v98 = vld [vmem:[#allocation0] sm:%s96]
    %s99 = sshllo.u32 0, 1
    %100 = vst [vmem:[%s1] sm:%s99] %v98

// kernel: aux_layer_pallas.1
$region0: #{aux_layer_pallas.1}
  #allocation0 [shape = 'u32[]', space=smem, size = 0x4, offset = 0x4, fixed_abs, tag = 'smem constant byte address 0x4 - core index']
  #allocation1 [shape = 'u32[144,128]{1,0:T(1,128)}', space=vmem, size = 0x12000, scoped, tag = 'internal scratch']
  %s0 = inlined_call_operand.vmem [shape: bf16[2,18,128], index: 0, kind: input, shape index: {}]
  %s1 = inlined_call_operand.vmem [shape: bf16[3,128,512], index: 1, kind: input, shape index: {}]
  %s2 = inlined_call_operand.vmem [shape: f32[1,512], index: 2, kind: input, shape index: {}]
  %s3 = inlined_call_operand.vmem [shape: bf16[512,128], index: 3, kind: input, shape index: {}]
  %s4 = inlined_call_operand.vmem [shape: f32[1,128], index: 4, kind: input, shape index: {}]
  %s5 = inlined_call_operand.vmem [shape: f32[2,16,128], index: 5, kind: output, shape index: {}]
  %s6 = sld [smem:[#allocation0]]
  $region53: #{aux_layer_pallas.1} parent=0
    _
  %s8 = ssub.s32 1, %s6
  %s9 = scalar_select 0, %s8, %s6
  loop: start=0, step=1, limit=4
  $region2: #{aux_layer_pallas.1} parent=0 // loop_pre_header
    _
  $region3: #{aux_layer_pallas.1} parent=0 // loop_header
    %s11 = sphi 0, %s15
    %p12 = scmp.ge.s32.totalorder %s11, 4
    %s21 = sphi 0, %s23
    %s24 = sphi 0, %s21
    %s25 = sphi 0, %s24
    %s41 = sphi 0, %s25
    %s45 = sphi 0, %s45
    %s47 = sphi 0, %s45
    %s48 = sphi 0, %s47
    %s62 = sphi 0, %s48
    %s66 = sphi 0, %s66
    %s68 = sphi 0, %s66
    %s69 = sphi 0, %s68
    %s83 = sphi 0, %s69
    %s87 = sphi 0, %s87
    %s89 = sphi 0, %s87
    %s90 = sphi 0, %s89
    %s104 = sphi 0, %s90
    %s108 = sphi 0, %s108
    %s110 = sphi 0, %s108
    %s111 = sphi 0, %s110
    %s125 = sphi 0, %s111
    %s131 = sphi 0, %s133
    %s134 = sphi 0, %s131
    %s135 = sphi 0, %s134
    %s151 = sphi 0, %s135
  $region4: #{aux_layer_pallas.1} parent=0 // loop_header_branch
    %14 = sbr.rel (%p12) target = $region8
  $region5: #{aux_layer_pallas.1} parent=0 // loop_body
    %s16 = ssub.s32 %s11, 1
    %s17 = ssub.s32 %s11, 2
    %s18 = sadd.s32 %s11, 1
    %s19 = ssub.s32 %s11, %s18
    %p20 = scmp.eq.s32.totalorder %s19, 0
    %s22 = sadd.s32 %s21, 1
    %s23 = scalar_select %p20, %s21, %s22
    %p26 = pneg %p20
    %p27 = scmp.eq.s32.totalorder %s11, 1
    %p28 = por %p26, %p27
    %p29 = scmp.ne.s32.totalorder %s21, %s24
    %p30 = scmp.eq.s32.totalorder %s11, 0
    %p31 = por %p29, %p30
    %p32 = scmp.ne.s32.totalorder %s21, %s24
    %p33 = scmp.eq.s32.totalorder %s16, 1
    %p34 = por %p32, %p33
    %p35 = scmp.ne.s32.totalorder %s24, %s25
    %p36 = scmp.eq.s32.totalorder %s16, 0
    %p37 = por %p35, %p36
    %p38 = scmp.ne.s32.totalorder %s24, %s25
    %p39 = scmp.eq.s32.totalorder %s17, 1
    %p40 = por %p38, %p39
    %p42 = scmp.ne.s32.totalorder %s25, %s41
    %p43 = scmp.eq.s32.totalorder %s17, 0
    %p44 = por %p42, %p43
    %s46 = sadd.s32 %s45, 1
    %p49 = scmp.eq.s32.totalorder %s11, 1
    %p50 = scmp.ne.s32.totalorder %s45, %s47
    %p51 = scmp.eq.s32.totalorder %s11, 0
    %p52 = por %p50, %p51
    %p53 = scmp.ne.s32.totalorder %s45, %s47
    %p54 = scmp.eq.s32.totalorder %s16, 1
    %p55 = por %p53, %p54
    %p56 = scmp.ne.s32.totalorder %s47, %s48
    %p57 = scmp.eq.s32.totalorder %s16, 0
    %p58 = por %p56, %p57
    %p59 = scmp.ne.s32.totalorder %s47, %s48
    %p60 = scmp.eq.s32.totalorder %s17, 1
    %p61 = por %p59, %p60
    %p63 = scmp.ne.s32.totalorder %s48, %s62
    %p64 = scmp.eq.s32.totalorder %s17, 0
    %p65 = por %p63, %p64
    %s67 = sadd.s32 %s66, 1
    %p70 = scmp.eq.s32.totalorder %s11, 1
    %p71 = scmp.ne.s32.totalorder %s66, %s68
    %p72 = scmp.eq.s32.totalorder %s11, 0
    %p73 = por %p71, %p72
    %p74 = scmp.ne.s32.totalorder %s66, %s68
    %p75 = scmp.eq.s32.totalorder %s16, 1
    %p76 = por %p74, %p75
    %p77 = scmp.ne.s32.totalorder %s68, %s69
    %p78 = scmp.eq.s32.totalorder %s16, 0
    %p79 = por %p77, %p78
    %p80 = scmp.ne.s32.totalorder %s68, %s69
    %p81 = scmp.eq.s32.totalorder %s17, 1
    %p82 = por %p80, %p81
    %p84 = scmp.ne.s32.totalorder %s69, %s83
    %p85 = scmp.eq.s32.totalorder %s17, 0
    %p86 = por %p84, %p85
    %s88 = sadd.s32 %s87, 1
    %p91 = scmp.eq.s32.totalorder %s11, 1
    %p92 = scmp.ne.s32.totalorder %s87, %s89
    %p93 = scmp.eq.s32.totalorder %s11, 0
    %p94 = por %p92, %p93
    %p95 = scmp.ne.s32.totalorder %s87, %s89
    %p96 = scmp.eq.s32.totalorder %s16, 1
    %p97 = por %p95, %p96
    %p98 = scmp.ne.s32.totalorder %s89, %s90
    %p99 = scmp.eq.s32.totalorder %s16, 0
    %p100 = por %p98, %p99
    %p101 = scmp.ne.s32.totalorder %s89, %s90
    %p102 = scmp.eq.s32.totalorder %s17, 1
    %p103 = por %p101, %p102
    %p105 = scmp.ne.s32.totalorder %s90, %s104
    %p106 = scmp.eq.s32.totalorder %s17, 0
    %p107 = por %p105, %p106
    %s109 = sadd.s32 %s108, 1
    %p112 = scmp.eq.s32.totalorder %s11, 1
    %p113 = scmp.ne.s32.totalorder %s108, %s110
    %p114 = scmp.eq.s32.totalorder %s11, 0
    %p115 = por %p113, %p114
    %p116 = scmp.ne.s32.totalorder %s108, %s110
    %p117 = scmp.eq.s32.totalorder %s16, 1
    %p118 = por %p116, %p117
    %p119 = scmp.ne.s32.totalorder %s110, %s111
    %p120 = scmp.eq.s32.totalorder %s16, 0
    %p121 = por %p119, %p120
    %p122 = scmp.ne.s32.totalorder %s110, %s111
    %p123 = scmp.eq.s32.totalorder %s17, 1
    %p124 = por %p122, %p123
    %p126 = scmp.ne.s32.totalorder %s111, %s125
    %p127 = scmp.eq.s32.totalorder %s17, 0
    %p128 = por %p126, %p127
    %s129 = ssub.s32 %s11, %s18
    %p130 = scmp.eq.s32.totalorder %s129, 0
    %s132 = sadd.s32 %s131, 1
    %s133 = scalar_select %p130, %s131, %s132
    %p136 = pneg %p130
    %p137 = scmp.eq.s32.totalorder %s11, 1
    %p138 = por %p136, %p137
    %p139 = scmp.ne.s32.totalorder %s131, %s134
    %p140 = scmp.eq.s32.totalorder %s11, 0
    %p141 = por %p139, %p140
    %p142 = scmp.ne.s32.totalorder %s131, %s134
    %p143 = scmp.eq.s32.totalorder %s16, 1
    %p144 = por %p142, %p143
    %p145 = scmp.ne.s32.totalorder %s134, %s135
    %p146 = scmp.eq.s32.totalorder %s16, 0
    %p147 = por %p145, %p146
    %p148 = scmp.ne.s32.totalorder %s134, %s135
    %p149 = scmp.eq.s32.totalorder %s17, 1
    %p150 = por %p148, %p149
    %p152 = scmp.ne.s32.totalorder %s135, %s151
    %p153 = scmp.eq.s32.totalorder %s17, 0
    %p154 = por %p152, %p153
    %p155 = scmp.le.s32.totalorder 1, %s11
    %p156 = scmp.lt.s32.totalorder %s11, 3
    %p157 = pnand %p155, %p156
    %p158 = pneg %p157
    // Predicated region
    $region9: #{aux_layer_pallas.1} parent=5 // pred_check
      _
    $region10: #{aux_layer_pallas.1} parent=5 // pred_check_branch
      %160 = sbr.rel (%p157) target = $region12
    $region11: #{aux_layer_pallas.1} parent=5 // pred_region
      %s161 = ssub.s32 %s11, 1
      // Predicated region
      $region13: #{aux_layer_pallas.1} parent=11 // pred_check
        %p162 = pneg %p58
      $region14: #{aux_layer_pallas.1} parent=11 // pred_check_branch
        %164 = sbr.rel (%p162) target = $region16
      $region15: #{aux_layer_pallas.1} parent=11 // pred_region
        _
      $region16: #{aux_layer_pallas.1} parent=11 // pred_fallthru
        _
      // Predicated region
      $region17: #{aux_layer_pallas.1} parent=11 // pred_check
        %p165 = pneg %p79
      $region18: #{aux_layer_pallas.1} parent=11 // pred_check_branch
        %167 = sbr.rel (%p165) target = $region20
      $region19: #{aux_layer_pallas.1} parent=11 // pred_region
        _
      $region20: #{aux_layer_pallas.1} parent=11 // pred_fallthru
        _
      // Predicated region
      $region21: #{aux_layer_pallas.1} parent=11 // pred_check
        %p168 = pneg %p100
      $region22: #{aux_layer_pallas.1} parent=11 // pred_check_branch
        %170 = sbr.rel (%p168) target = $region24
      $region23: #{aux_layer_pallas.1} parent=11 // pred_region
        _
      $region24: #{aux_layer_pallas.1} parent=11 // pred_fallthru
        _
      // Predicated region
      $region25: #{aux_layer_pallas.1} parent=11 // pred_check
        %p171 = pneg %p121
      $region26: #{aux_layer_pallas.1} parent=11 // pred_check_branch
        %173 = sbr.rel (%p171) target = $region28
      $region27: #{aux_layer_pallas.1} parent=11 // pred_region
        _
      $region28: #{aux_layer_pallas.1} parent=11 // pred_fallthru
        _
    $region12: #{aux_layer_pallas.1} parent=5 // pred_fallthru
      _
    %p174 = scmp.lt.s32.totalorder %s11, 2
    // Predicated region
    $region29: #{aux_layer_pallas.1} parent=5 // pred_check
      %p175 = pneg %p174
    $region30: #{aux_layer_pallas.1} parent=5 // pred_check_branch
      %177 = sbr.rel (%p175) target = $region32
    $region31: #{aux_layer_pallas.1} parent=5 // pred_region
      // Predicated region
      $region33: #{aux_layer_pallas.1} parent=31 // pred_check
        %p178 = pneg %p31
      $region34: #{aux_layer_pallas.1} parent=31 // pred_check_branch
        %180 = sbr.rel (%p178) target = $region36
      $region35: #{aux_layer_pallas.1} parent=31 // pred_region
        %p181 = scmp.lt.s32.totalorder %s11, 1
        %s182 = scalar_select %p181, %s11, 1
        %s183 = smul.addr %s182, 3
        %s184 = smul.addr %s183, 4
        %s185 = scalar_lea.vmem %s0, %s184
      $region36: #{aux_layer_pallas.1} parent=31 // pred_fallthru
        _
    $region32: #{aux_layer_pallas.1} parent=5 // pred_fallthru
      _
    %p186 = scmp.le.s32.totalorder 1, %s11
    %p187 = scmp.lt.s32.totalorder %s11, 3
    %p188 = pnand %p186, %p187
    %p189 = pneg %p188
    // Predicated region
    $region37: #{aux_layer_pallas.1} parent=5 // pred_check
      _
    $region38: #{aux_layer_pallas.1} parent=5 // pred_check_branch
      %191 = sbr.rel (%p188) target = $region40
    $region39: #{aux_layer_pallas.1} parent=5 // pred_region
      %s192 = ssub.s32 %s11, 1
      %p193 = scmp.lt.s32.totalorder %s16, 1
      %s194 = scalar_select %p193, %s16, 1
      %s195 = smul.addr %s194, 3
      %s196 = smul.addr %s195, 4
      %s197 = scalar_lea.vmem %s0, %s196
      %p198 = pneg %p37
      %p199 = pneg %p34
      %p200 = pneg %p58
      %p201 = pneg %p55
      %p202 = pneg %p79
      %p203 = pneg %p76
      %p204 = pneg %p100
      %p205 = pneg %p97
      %p206 = pneg %p121
      %p207 = pneg %p118
      %p208 = pneg %p147
      %p209 = pneg %p144
      %p210 = scmp.lt.s32.totalorder %s16, 1
      %s211 = scalar_select %p210, %s16, 1
      %s212 = smul.addr %s211, 2
      %s213 = smul.addr %s212, 8
      %s214 = scalar_lea.vmem %s5, %s213
      %p215 = scmp.lt.s32.totalorder %s16, 1
      %s216 = scalar_select %p215, %s16, 1
      %s217 = smul.addr %s216, 3
      %s218 = smul.addr %s217, 4
      %s219 = scalar_lea.vmem %s0, %s218
      %p220 = scmp.lt.s32.totalorder %s16, 1
      %s221 = scalar_select %p220, %s16, 1
      %s222 = smul.addr %s221, 2
      %s223 = smul.addr %s222, 8
      %s224 = scalar_lea.vmem %s5, %s223
      %v226 = vld [vmem:[%s219] sm:$0xf]
      %v227 = vld [vmem:[%s219 + $0x4] sm:$0xf]
      %v228 = vld [vmem:[%s219 + $0x8] sm:$0x1]
      %v229 = vld [vmem:[%s1] sm:$0xff]
      %v230 = vld [vmem:[%s1 + $0x8] sm:$0xff]
      %v231 = vld [vmem:[%s1 + $0x10] sm:$0xff]
      %v232 = vld [vmem:[%s1 + $0x18] sm:$0xff]
      %v233 = vld [vmem:[%s1 + $0x20] sm:$0xff]
      %v234 = vld [vmem:[%s1 + $0x28] sm:$0xff]
      %v235 = vld [vmem:[%s1 + $0x30] sm:$0xff]
      %v236 = vld [vmem:[%s1 + $0x38] sm:$0xff]
      %v237 = vld [vmem:[%s1 + $0x40] sm:$0xff]
      %v238 = vld [vmem:[%s1 + $0x48] sm:$0xff]
      %v239 = vld [vmem:[%s1 + $0x50] sm:$0xff]
      %v240 = vld [vmem:[%s1 + $0x58] sm:$0xff]
      %v241 = vld [vmem:[%s1 + $0x60] sm:$0xff]
      %v242 = vld [vmem:[%s1 + $0x68] sm:$0xff]
      %v243 = vld [vmem:[%s1 + $0x70] sm:$0xff]
      %v244 = vld [vmem:[%s1 + $0x78] sm:$0xff]
      %v245 = vld [vmem:[%s1 + $0x80] sm:$0xff]
      %v246 = vld [vmem:[%s1 + $0x88] sm:$0xff]
      %v247 = vld [vmem:[%s1 + $0x90] sm:$0xff]
      %v248 = vld [vmem:[%s1 + $0x98] sm:$0xff]
      %v249 = vld [vmem:[%s1 + $0xa0] sm:$0xff]
      %v250 = vld [vmem:[%s1 + $0xa8] sm:$0xff]
      %v251 = vld [vmem:[%s1 + $0xb0] sm:$0xff]
      %v252 = vld [vmem:[%s1 + $0xb8] sm:$0xff]
      %v253 = vld [vmem:[%s1 + $0xc0] sm:$0xff]
      %v254 = vld [vmem:[%s1 + $0xc8] sm:$0xff]
      %v255 = vld [vmem:[%s1 + $0xd0] sm:$0xff]
      %v256 = vld [vmem:[%s1 + $0xd8] sm:$0xff]
      %v257 = vld [vmem:[%s1 + $0xe0] sm:$0xff]
      %v258 = vld [vmem:[%s1 + $0xe8] sm:$0xff]
      %v259 = vld [vmem:[%s1 + $0xf0] sm:$0xff]
      %v260 = vld [vmem:[%s1 + $0xf8] sm:$0xff]
      %s261 = scalar_lea.vmem %s1, 256
      %v262 = vld [vmem:[%s261] sm:$0xff]
      %v263 = vld [vmem:[%s261 + $0x8] sm:$0xff]
      %v264 = vld [vmem:[%s261 + $0x10] sm:$0xff]
      %v265 = vld [vmem:[%s261 + $0x18] sm:$0xff]
      %v266 = vld [vmem:[%s261 + $0x20] sm:$0xff]
      %v267 = vld [vmem:[%s261 + $0x28] sm:$0xff]
      %v268 = vld [vmem:[%s261 + $0x30] sm:$0xff]
      %v269 = vld [vmem:[%s261 + $0x38] sm:$0xff]
      %v270 = vld [vmem:[%s261 + $0x40] sm:$0xff]
      %v271 = vld [vmem:[%s261 + $0x48] sm:$0xff]
      %v272 = vld [vmem:[%s261 + $0x50] sm:$0xff]
      %v273 = vld [vmem:[%s261 + $0x58] sm:$0xff]
      %v274 = vld [vmem:[%s261 + $0x60] sm:$0xff]
      %v275 = vld [vmem:[%s261 + $0x68] sm:$0xff]
      %v276 = vld [vmem:[%s261 + $0x70] sm:$0xff]
      %v277 = vld [vmem:[%s261 + $0x78] sm:$0xff]
      %v278 = vld [vmem:[%s261 + $0x80] sm:$0xff]
      %v279 = vld [vmem:[%s261 + $0x88] sm:$0xff]
      %v280 = vld [vmem:[%s261 + $0x90] sm:$0xff]
      %v281 = vld [vmem:[%s261 + $0x98] sm:$0xff]
      %v282 = vld [vmem:[%s261 + $0xa0] sm:$0xff]
      %v283 = vld [vmem:[%s261 + $0xa8] sm:$0xff]
      %v284 = vld [vmem:[%s261 + $0xb0] sm:$0xff]
      %v285 = vld [vmem:[%s261 + $0xb8] sm:$0xff]
      %v286 = vld [vmem:[%s261 + $0xc0] sm:$0xff]
      %v287 = vld [vmem:[%s261 + $0xc8] sm:$0xff]
      %v288 = vld [vmem:[%s261 + $0xd0] sm:$0xff]
      %v289 = vld [vmem:[%s261 + $0xd8] sm:$0xff]
      %v290 = vld [vmem:[%s261 + $0xe0] sm:$0xff]
      %v291 = vld [vmem:[%s261 + $0xe8] sm:$0xff]
      %v292 = vld [vmem:[%s261 + $0xf0] sm:$0xff]
      %v293 = vld [vmem:[%s261 + $0xf8] sm:$0xff]
      %v297 = vunpack.c.l.b16 %v226
      %v298 = vunpack.c.l.b16 %v227
      %v299 = vunpack.c.l.b16 %v228
      %v300 = vpack.c.b16 %v298, %v297
      %v301 = vpack.c.b16 %v299, %v299
      %vm302 = vsmask.f32 7424
      %v304 = vshrl.u32 %v300, 16
      %v306 = vshll.u32 %v300, 16
      %v308 = vrot.slane %v306, 1
      %v309 = vor.u32 %v304, %v308
      %v311 = vshll.u32 %v301, 16
      %v313 = vrot.slane %v311, 1
      %v314 = vsel %vm302, %v309, %v313
      %v348 = vunpack.c.l.b16 %v262
      %v349 = vunpack.c.h.b16 %v262
      %v350 = vunpack.c.l.b16 %v263
      %v351 = vunpack.c.h.b16 %v263
      %v352 = vunpack.c.l.b16 %v264
      %v353 = vunpack.c.h.b16 %v264
      %v354 = vunpack.c.l.b16 %v265
      %v355 = vunpack.c.h.b16 %v265
      %v356 = vunpack.c.l.b16 %v266
      %v357 = vunpack.c.h.b16 %v266
      %v358 = vunpack.c.l.b16 %v267
      %v359 = vunpack.c.h.b16 %v267
      %v360 = vunpack.c.l.b16 %v268
      %v361 = vunpack.c.h.b16 %v268
      %v362 = vunpack.c.l.b16 %v269
      %v363 = vunpack.c.h.b16 %v269
      %v364 = vunpack.c.l.b16 %v270
      %v365 = vunpack.c.h.b16 %v270
      %v366 = vunpack.c.l.b16 %v271
      %v367 = vunpack.c.h.b16 %v271
      %v368 = vunpack.c.l.b16 %v272
      %v369 = vunpack.c.h.b16 %v272
      %v370 = vunpack.c.l.b16 %v273
      %v371 = vunpack.c.h.b16 %v273
      %v372 = vunpack.c.l.b16 %v274
      %v373 = vunpack.c.h.b16 %v274
      %v374 = vunpack.c.l.b16 %v275
      %v375 = vunpack.c.h.b16 %v275
      %v376 = vunpack.c.l.b16 %v276
      %v377 = vunpack.c.h.b16 %v276
      %v378 = vunpack.c.l.b16 %v277
      %v379 = vunpack.c.h.b16 %v277
      %v380 = vunpack.c.l.b16 %v278
      %v381 = vunpack.c.h.b16 %v278
      %v382 = vunpack.c.l.b16 %v279
      %v383 = vunpack.c.h.b16 %v279
      %v384 = vunpack.c.l.b16 %v280
      %v385 = vunpack.c.h.b16 %v280
      %v386 = vunpack.c.l.b16 %v281
      %v387 = vunpack.c.h.b16 %v281
      %v388 = vunpack.c.l.b16 %v282
      %v389 = vunpack.c.h.b16 %v282
      %v390 = vunpack.c.l.b16 %v283
      %v391 = vunpack.c.h.b16 %v283
      %v392 = vunpack.c.l.b16 %v284
      %v393 = vunpack.c.h.b16 %v284
      %v394 = vunpack.c.l.b16 %v285
      %v395 = vunpack.c.h.b16 %v285
      %v396 = vunpack.c.l.b16 %v286
      %v397 = vunpack.c.h.b16 %v286
      %v398 = vunpack.c.l.b16 %v287
      %v399 = vunpack.c.h.b16 %v287
      %v400 = vunpack.c.l.b16 %v288
      %v401 = vunpack.c.h.b16 %v288
      %v402 = vunpack.c.l.b16 %v289
      %v403 = vunpack.c.h.b16 %v289
      %v404 = vunpack.c.l.b16 %v290
      %v405 = vunpack.c.h.b16 %v290
      %v406 = vunpack.c.l.b16 %v291
      %v407 = vunpack.c.h.b16 %v291
      %v408 = vunpack.c.l.b16 %v292
      %v409 = vunpack.c.h.b16 %v292
      %v410 = vunpack.c.l.b16 %v293
      %v411 = vunpack.c.h.b16 %v293
      %v412 = vpack.c.b16 %v352, %v348
      %v413 = vpack.c.b16 %v353, %v349
      %v414 = vpack.c.b16 %v354, %v350
      %v415 = vpack.c.b16 %v355, %v351
      %v416 = vpack.c.b16 %v360, %v356
      %v417 = vpack.c.b16 %v361, %v357
      %v418 = vpack.c.b16 %v362, %v358
      %v419 = vpack.c.b16 %v363, %v359
      %v420 = vpack.c.b16 %v368, %v364
      %v421 = vpack.c.b16 %v369, %v365
      %v422 = vpack.c.b16 %v370, %v366
      %v423 = vpack.c.b16 %v371, %v367
      %v424 = vpack.c.b16 %v376, %v372
      %v425 = vpack.c.b16 %v377, %v373
      %v426 = vpack.c.b16 %v378, %v374
      %v427 = vpack.c.b16 %v379, %v375
      %v428 = vpack.c.b16 %v384, %v380
      %v429 = vpack.c.b16 %v385, %v381
      %v430 = vpack.c.b16 %v386, %v382
      %v431 = vpack.c.b16 %v387, %v383
      %v432 = vpack.c.b16 %v392, %v388
      %v433 = vpack.c.b16 %v393, %v389
      %v434 = vpack.c.b16 %v394, %v390
      %v435 = vpack.c.b16 %v395, %v391
      %v436 = vpack.c.b16 %v400, %v396
      %v437 = vpack.c.b16 %v401, %v397
      %v438 = vpack.c.b16 %v402, %v398
      %v439 = vpack.c.b16 %v403, %v399
      %v440 = vpack.c.b16 %v408, %v404
      %v441 = vpack.c.b16 %v409, %v405
      %v442 = vpack.c.b16 %v410, %v406
      %v443 = vpack.c.b16 %v411, %v407
      %476 = vmatprep.subr.bf16.mxu0 %v413
      %477 = vmatpush1.bf16.msra.mxu0 %v412
      %478 = vmatprep.subr.bf16.mxu0 %v417
      %479 = vmatpush1.bf16.msra.mxu0 %v416
      %480 = vmatprep.subr.bf16.mxu0 %v421
      %481 = vmatpush1.bf16.msra.mxu0 %v420
      %482 = vmatprep.subr.bf16.mxu0 %v425
      %483 = vmatpush1.bf16.msra.mxu0 %v424
      %484 = vmatprep.subr.bf16.mxu0 %v429
      %485 = vmatpush1.bf16.msra.mxu0 %v428
      %486 = vmatprep.subr.bf16.mxu0 %v433
      %487 = vmatpush1.bf16.msra.mxu0 %v432
      %488 = vmatprep.subr.bf16.mxu0 %v437
      %489 = vmatpush1.bf16.msra.mxu0 %v436
      %490 = vmatprep.subr.bf16.mxu0 %v441
      %491 = vmatpush1.bf16.msra.mxu0 %v440
      %492 = vmatprep.subr.bf16.mxu0 0
      %493 = vmatpush1.bf16.msra.mxu0 0
      %494 = vmatprep.subr.bf16.mxu0 0
      %495 = vmatpush1.bf16.msra.mxu0 0
      %496 = vmatprep.subr.bf16.mxu0 0
      %497 = vmatpush1.bf16.msra.mxu0 0
      %498 = vmatprep.subr.bf16.mxu0 0
      %499 = vmatpush1.bf16.msra.mxu0 0
      %500 = vmatprep.subr.bf16.mxu0 0
      %501 = vmatpush1.bf16.msra.mxu0 0
      %502 = vmatprep.subr.bf16.mxu0 0
      %503 = vmatpush1.bf16.msra.mxu0 0
      %504 = vmatprep.subr.bf16.mxu0 0
      %505 = vmatpush1.bf16.msra.mxu0 0
      %506 = vmatprep.subr.bf16.mxu0 0
      %507 = vmatpush1.bf16.msra.mxu0 0
      %508 = vmatprep.mubr.bf16.mxu0 0
      %509 = vmatmul.mubr.bf16.gmra.mrb[0].mxu0 %v314
      %v510 = vpop.f32.mrb[0].mxu0
      %v511 = vadd.f32 0.0, %v510
      %v512 = vpop.f32.mrb[0].mxu0
      %v513 = vadd.f32 0.0, %v512
      %v514 = vpop.f32.mrb[0].mxu0
      %v515 = vadd.f32 0.0, %v514
      %v516 = vpop.f32.mrb[0].mxu0
      %v517 = vadd.f32 0.0, %v516
      %518 = vdwg.mxu0
      %519 = vmatprep.subr.bf16.mxu0 %v415
      %520 = vmatpush1.bf16.msra.mxu0 %v414
      %521 = vmatprep.subr.bf16.mxu0 %v419
      %522 = vmatpush1.bf16.msra.mxu0 %v418
      %523 = vmatprep.subr.bf16.mxu0 %v423
      %524 = vmatpush1.bf16.msra.mxu0 %v422
      %525 = vmatprep.subr.bf16.mxu0 %v427
      %526 = vmatpush1.bf16.msra.mxu0 %v426
      %527 = vmatprep.subr.bf16.mxu0 %v431
      %528 = vmatpush1.bf16.msra.mxu0 %v430
      %529 = vmatprep.subr.bf16.mxu0 %v435
      %530 = vmatpush1.bf16.msra.mxu0 %v434
      %531 = vmatprep.subr.bf16.mxu0 %v439
      %532 = vmatpush1.bf16.msra.mxu0 %v438
      %533 = vmatprep.subr.bf16.mxu0 %v443
      %534 = vmatpush1.bf16.msra.mxu0 %v442
      %535 = vmatprep.subr.bf16.mxu0 0
      %536 = vmatpush1.bf16.msra.mxu0 0
      %537 = vmatprep.subr.bf16.mxu0 0
      %538 = vmatpush1.bf16.msra.mxu0 0
      %539 = vmatprep.subr.bf16.mxu0 0
      %540 = vmatpush1.bf16.msra.mxu0 0
      %541 = vmatprep.subr.bf16.mxu0 0
      %542 = vmatpush1.bf16.msra.mxu0 0
      %543 = vmatprep.subr.bf16.mxu0 0
      %544 = vmatpush1.bf16.msra.mxu0 0
      %545 = vmatprep.subr.bf16.mxu0 0
      %546 = vmatpush1.bf16.msra.mxu0 0
      %547 = vmatprep.subr.bf16.mxu0 0
      %548 = vmatpush1.bf16.msra.mxu0 0
      %549 = vmatprep.subr.bf16.mxu0 0
      %550 = vmatpush1.bf16.msra.mxu0 0
      %551 = vmatprep.mubr.bf16.mxu0 0
      %552 = vmatmul.mubr.bf16.gmra.mrb[0].mxu0 %v314
      %v553 = vpop.f32.mrb[0].mxu0
      %v554 = vadd.f32 0.0, %v553
      %v555 = vpop.f32.mrb[0].mxu0
      %v556 = vadd.f32 0.0, %v555
      %v557 = vpop.f32.mrb[0].mxu0
      %v558 = vadd.f32 0.0, %v557
      %v559 = vpop.f32.mrb[0].mxu0
      %v560 = vadd.f32 0.0, %v559
      %561 = vdwg.mxu0
      %v595 = vunpack.c.l.b16 %v229
      %v596 = vunpack.c.h.b16 %v229
      %v597 = vunpack.c.l.b16 %v230
      %v598 = vunpack.c.h.b16 %v230
      %v599 = vunpack.c.l.b16 %v231
      %v600 = vunpack.c.h.b16 %v231
      %v601 = vunpack.c.l.b16 %v232
      %v602 = vunpack.c.h.b16 %v232
      %v603 = vunpack.c.l.b16 %v233
      %v604 = vunpack.c.h.b16 %v233
      %v605 = vunpack.c.l.b16 %v234
      %v606 = vunpack.c.h.b16 %v234
      %v607 = vunpack.c.l.b16 %v235
      %v608 = vunpack.c.h.b16 %v235
      %v609 = vunpack.c.l.b16 %v236
      %v610 = vunpack.c.h.b16 %v236
      %v611 = vunpack.c.l.b16 %v237
      %v612 = vunpack.c.h.b16 %v237
      %v613 = vunpack.c.l.b16 %v238
      %v614 = vunpack.c.h.b16 %v238
      %v615 = vunpack.c.l.b16 %v239
      %v616 = vunpack.c.h.b16 %v239
      %v617 = vunpack.c.l.b16 %v240
      %v618 = vunpack.c.h.b16 %v240
      %v619 = vunpack.c.l.b16 %v241
      %v620 = vunpack.c.h.b16 %v241
      %v621 = vunpack.c.l.b16 %v242
      %v622 = vunpack.c.h.b16 %v242
      %v623 = vunpack.c.l.b16 %v243
      %v624 = vunpack.c.h.b16 %v243
      %v625 = vunpack.c.l.b16 %v244
      %v626 = vunpack.c.h.b16 %v244
      %v627 = vunpack.c.l.b16 %v245
      %v628 = vunpack.c.h.b16 %v245
      %v629 = vunpack.c.l.b16 %v246
      %v630 = vunpack.c.h.b16 %v246
      %v631 = vunpack.c.l.b16 %v247
      %v632 = vunpack.c.h.b16 %v247
      %v633 = vunpack.c.l.b16 %v248
      %v634 = vunpack.c.h.b16 %v248
      %v635 = vunpack.c.l.b16 %v249
      %v636 = vunpack.c.h.b16 %v249
      %v637 = vunpack.c.l.b16 %v250
      %v638 = vunpack.c.h.b16 %v250
      %v639 = vunpack.c.l.b16 %v251
      %v640 = vunpack.c.h.b16 %v251
      %v641 = vunpack.c.l.b16 %v252
      %v642 = vunpack.c.h.b16 %v252
      %v643 = vunpack.c.l.b16 %v253
      %v644 = vunpack.c.h.b16 %v253
      %v645 = vunpack.c.l.b16 %v254
      %v646 = vunpack.c.h.b16 %v254
      %v647 = vunpack.c.l.b16 %v255
      %v648 = vunpack.c.h.b16 %v255
      %v649 = vunpack.c.l.b16 %v256
      %v650 = vunpack.c.h.b16 %v256
      %v651 = vunpack.c.l.b16 %v257
      %v652 = vunpack.c.h.b16 %v257
      %v653 = vunpack.c.l.b16 %v258
      %v654 = vunpack.c.h.b16 %v258
      %v655 = vunpack.c.l.b16 %v259
      %v656 = vunpack.c.h.b16 %v259
      %v657 = vunpack.c.l.b16 %v260
      %v658 = vunpack.c.h.b16 %v260
      %v659 = vpack.c.b16 %v599, %v595
      %v660 = vpack.c.b16 %v600, %v596
      %v661 = vpack.c.b16 %v601, %v597
      %v662 = vpack.c.b16 %v602, %v598
      %v663 = vpack.c.b16 %v607, %v603
      %v664 = vpack.c.b16 %v608, %v604
      %v665 = vpack.c.b16 %v609, %v605
      %v666 = vpack.c.b16 %v610, %v606
      %v667 = vpack.c.b16 %v615, %v611
      %v668 = vpack.c.b16 %v616, %v612
      %v669 = vpack.c.b16 %v617, %v613
      %v670 = vpack.c.b16 %v618, %v614
      %v671 = vpack.c.b16 %v623, %v619
      %v672 = vpack.c.b16 %v624, %v620
      %v673 = vpack.c.b16 %v625, %v621
      %v674 = vpack.c.b16 %v626, %v622
      %v675 = vpack.c.b16 %v631, %v627
      %v676 = vpack.c.b16 %v632, %v628
      %v677 = vpack.c.b16 %v633, %v629
      %v678 = vpack.c.b16 %v634, %v630
      %v679 = vpack.c.b16 %v639, %v635
      %v680 = vpack.c.b16 %v640, %v636
      %v681 = vpack.c.b16 %v641, %v637
      %v682 = vpack.c.b16 %v642, %v638
      %v683 = vpack.c.b16 %v647, %v643
      %v684 = vpack.c.b16 %v648, %v644
      %v685 = vpack.c.b16 %v649, %v645
      %v686 = vpack.c.b16 %v650, %v646
      %v687 = vpack.c.b16 %v655, %v651
      %v688 = vpack.c.b16 %v656, %v652
      %v689 = vpack.c.b16 %v657, %v653
      %v690 = vpack.c.b16 %v658, %v654
      %723 = vmatprep.subr.bf16.mxu0 %v660
      %724 = vmatpush1.bf16.msra.mxu0 %v659
      %725 = vmatprep.subr.bf16.mxu0 %v664
      %726 = vmatpush1.bf16.msra.mxu0 %v663
      %727 = vmatprep.subr.bf16.mxu0 %v668
      %728 = vmatpush1.bf16.msra.mxu0 %v667
      %729 = vmatprep.subr.bf16.mxu0 %v672
      %730 = vmatpush1.bf16.msra.mxu0 %v671
      %731 = vmatprep.subr.bf16.mxu0 %v676
      %732 = vmatpush1.bf16.msra.mxu0 %v675
      %733 = vmatprep.subr.bf16.mxu0 %v680
      %734 = vmatpush1.bf16.msra.mxu0 %v679
      %735 = vmatprep.subr.bf16.mxu0 %v684
      %736 = vmatpush1.bf16.msra.mxu0 %v683
      %737 = vmatprep.subr.bf16.mxu0 %v688
      %738 = vmatpush1.bf16.msra.mxu0 %v687
      %739 = vmatprep.subr.bf16.mxu0 0
      %740 = vmatpush1.bf16.msra.mxu0 0
      %741 = vmatprep.subr.bf16.mxu0 0
      %742 = vmatpush1.bf16.msra.mxu0 0
      %743 = vmatprep.subr.bf16.mxu0 0
      %744 = vmatpush1.bf16.msra.mxu0 0
      %745 = vmatprep.subr.bf16.mxu0 0
      %746 = vmatpush1.bf16.msra.mxu0 0
      %747 = vmatprep.subr.bf16.mxu0 0
      %748 = vmatpush1.bf16.msra.mxu0 0
      %749 = vmatprep.subr.bf16.mxu0 0
      %750 = vmatpush1.bf16.msra.mxu0 0
      %751 = vmatprep.subr.bf16.mxu0 0
      %752 = vmatpush1.bf16.msra.mxu0 0
      %753 = vmatprep.subr.bf16.mxu0 0
      %754 = vmatpush1.bf16.msra.mxu0 0
      %755 = vmatprep.mubr.bf16.mxu0 0
      %756 = vmatmul.mubr.bf16.gmra.mrb[0].mxu0 %v300
      %v757 = vpop.f32.mrb[0].mxu0
      %v758 = vadd.f32 %v511, %v757
      %v759 = vpop.f32.mrb[0].mxu0
      %v760 = vadd.f32 %v513, %v759
      %v761 = vpop.f32.mrb[0].mxu0
      %v762 = vadd.f32 %v515, %v761
      %v763 = vpop.f32.mrb[0].mxu0
      %v764 = vadd.f32 %v517, %v763
      %765 = vdwg.mxu0
      %766 = vmatprep.subr.bf16.mxu0 %v662
      %767 = vmatpush1.bf16.msra.mxu0 %v661
      %768 = vmatprep.subr.bf16.mxu0 %v666
      %769 = vmatpush1.bf16.msra.mxu0 %v665
      %770 = vmatprep.subr.bf16.mxu0 %v670
      %771 = vmatpush1.bf16.msra.mxu0 %v669
      %772 = vmatprep.subr.bf16.mxu0 %v674
      %773 = vmatpush1.bf16.msra.mxu0 %v673
      %774 = vmatprep.subr.bf16.mxu0 %v678
      %775 = vmatpush1.bf16.msra.mxu0 %v677
      %776 = vmatprep.subr.bf16.mxu0 %v682
      %777 = vmatpush1.bf16.msra.mxu0 %v681
      %778 = vmatprep.subr.bf16.mxu0 %v686
      %779 = vmatpush1.bf16.msra.mxu0 %v685
      %780 = vmatprep.subr.bf16.mxu0 %v690
      %781 = vmatpush1.bf16.msra.mxu0 %v689
      %782 = vmatprep.subr.bf16.mxu0 0
      %783 = vmatpush1.bf16.msra.mxu0 0
      %784 = vmatprep.subr.bf16.mxu0 0
      %785 = vmatpush1.bf16.msra.mxu0 0
      %786 = vmatprep.subr.bf16.mxu0 0
      %787 = vmatpush1.bf16.msra.mxu0 0
      %788 = vmatprep.subr.bf16.mxu0 0
      %789 = vmatpush1.bf16.msra.mxu0 0
      %790 = vmatprep.subr.bf16.mxu0 0
      %791 = vmatpush1.bf16.msra.mxu0 0
      %792 = vmatprep.subr.bf16.mxu0 0
      %793 = vmatpush1.bf16.msra.mxu0 0
      %794 = vmatprep.subr.bf16.mxu0 0
      %795 = vmatpush1.bf16.msra.mxu0 0
      %796 = vmatprep.subr.bf16.mxu0 0
      %797 = vmatpush1.bf16.msra.mxu0 0
      %798 = vmatprep.mubr.bf16.mxu0 0
      %799 = vmatmul.mubr.bf16.gmra.mrb[0].mxu0 %v300
      %v800 = vpop.f32.mrb[0].mxu0
      %v801 = vadd.f32 %v554, %v800
      %v802 = vpop.f32.mrb[0].mxu0
      %v803 = vadd.f32 %v556, %v802
      %v804 = vpop.f32.mrb[0].mxu0
      %v805 = vadd.f32 %v558, %v804
      %v806 = vpop.f32.mrb[0].mxu0
      %v807 = vadd.f32 %v560, %v806
      %808 = vdwg.mxu0
      %s809 = scalar_lea.vmem %s1, 512
      %v810 = vld [vmem:[%s809] sm:$0xff]
      %v811 = vld [vmem:[%s809 + $0x8] sm:$0xff]
      %v812 = vld [vmem:[%s809 + $0x10] sm:$0xff]
      %v813 = vld [vmem:[%s809 + $0x18] sm:$0xff]
      %v814 = vld [vmem:[%s809 + $0x20] sm:$0xff]
      %v815 = vld [vmem:[%s809 + $0x28] sm:$0xff]
      %v816 = vld [vmem:[%s809 + $0x30] sm:$0xff]
      %v817 = vld [vmem:[%s809 + $0x38] sm:$0xff]
      %v818 = vld [vmem:[%s809 + $0x40] sm:$0xff]
      %v819 = vld [vmem:[%s809 + $0x48] sm:$0xff]
      %v820 = vld [vmem:[%s809 + $0x50] sm:$0xff]
      %v821 = vld [vmem:[%s809 + $0x58] sm:$0xff]
      %v822 = vld [vmem:[%s809 + $0x60] sm:$0xff]
      %v823 = vld [vmem:[%s809 + $0x68] sm:$0xff]
      %v824 = vld [vmem:[%s809 + $0x70] sm:$0xff]
      %v825 = vld [vmem:[%s809 + $0x78] sm:$0xff]
      %v826 = vld [vmem:[%s809 + $0x80] sm:$0xff]
      %v827 = vld [vmem:[%s809 + $0x88] sm:$0xff]
      %v828 = vld [vmem:[%s809 + $0x90] sm:$0xff]
      %v829 = vld [vmem:[%s809 + $0x98] sm:$0xff]
      %v830 = vld [vmem:[%s809 + $0xa0] sm:$0xff]
      %v831 = vld [vmem:[%s809 + $0xa8] sm:$0xff]
      %v832 = vld [vmem:[%s809 + $0xb0] sm:$0xff]
      %v833 = vld [vmem:[%s809 + $0xb8] sm:$0xff]
      %v834 = vld [vmem:[%s809 + $0xc0] sm:$0xff]
      %v835 = vld [vmem:[%s809 + $0xc8] sm:$0xff]
      %v836 = vld [vmem:[%s809 + $0xd0] sm:$0xff]
      %v837 = vld [vmem:[%s809 + $0xd8] sm:$0xff]
      %v838 = vld [vmem:[%s809 + $0xe0] sm:$0xff]
      %v839 = vld [vmem:[%s809 + $0xe8] sm:$0xff]
      %v840 = vld [vmem:[%s809 + $0xf0] sm:$0xff]
      %v841 = vld [vmem:[%s809 + $0xf8] sm:$0xff]
      %vm842 = vcmask 1046528
      %v843 = vrot.slane %v300, 1
      %v844 = vrot.slane %v301, 1
      %v845 = vsel %vm842, %v843, %v844
      %v879 = vunpack.c.l.b16 %v810
      %v880 = vunpack.c.h.b16 %v810
      %v881 = vunpack.c.l.b16 %v811
      %v882 = vunpack.c.h.b16 %v811
      %v883 = vunpack.c.l.b16 %v812
      %v884 = vunpack.c.h.b16 %v812
      %v885 = vunpack.c.l.b16 %v813
      %v886 = vunpack.c.h.b16 %v813
      %v887 = vunpack.c.l.b16 %v814
      %v888 = vunpack.c.h.b16 %v814
      %v889 = vunpack.c.l.b16 %v815
      %v890 = vunpack.c.h.b16 %v815
      %v891 = vunpack.c.l.b16 %v816
      %v892 = vunpack.c.h.b16 %v816
      %v893 = vunpack.c.l.b16 %v817
      %v894 = vunpack.c.h.b16 %v817
      %v895 = vunpack.c.l.b16 %v818
      %v896 = vunpack.c.h.b16 %v818
      %v897 = vunpack.c.l.b16 %v819
      %v898 = vunpack.c.h.b16 %v819
      %v899 = vunpack.c.l.b16 %v820
      %v900 = vunpack.c.h.b16 %v820
      %v901 = vunpack.c.l.b16 %v821
      %v902 = vunpack.c.h.b16 %v821
      %v903 = vunpack.c.l.b16 %v822
      %v904 = vunpack.c.h.b16 %v822
      %v905 = vunpack.c.l.b16 %v823
      %v906 = vunpack.c.h.b16 %v823
      %v907 = vunpack.c.l.b16 %v824
      %v908 = vunpack.c.h.b16 %v824
      %v909 = vunpack.c.l.b16 %v825
      %v910 = vunpack.c.h.b16 %v825
      %v911 = vunpack.c.l.b16 %v826
      %v912 = vunpack.c.h.b16 %v826
      %v913 = vunpack.c.l.b16 %v827
      %v914 = vunpack.c.h.b16 %v827
      %v915 = vunpack.c.l.b16 %v828
      %v916 = vunpack.c.h.b16 %v828
      %v917 = vunpack.c.l.b16 %v829
      %v918 = vunpack.c.h.b16 %v829
      %v919 = vunpack.c.l.b16 %v830
      %v920 = vunpack.c.h.b16 %v830
      %v921 = vunpack.c.l.b16 %v831
      %v922 = vunpack.c.h.b16 %v831
      %v923 = vunpack.c.l.b16 %v832
      %v924 = vunpack.c.h.b16 %v832
      %v925 = vunpack.c.l.b16 %v833
      %v926 = vunpack.c.h.b16 %v833
      %v927 = vunpack.c.l.b16 %v834
      %v928 = vunpack.c.h.b16 %v834
      %v929 = vunpack.c.l.b16 %v835
      %v930 = vunpack.c.h.b16 %v835
      %v931 = vunpack.c.l.b16 %v836
      %v932 = vunpack.c.h.b16 %v836
      %v933 = vunpack.c.l.b16 %v837
      %v934 = vunpack.c.h.b16 %v837
      %v935 = vunpack.c.l.b16 %v838
      %v936 = vunpack.c.h.b16 %v838
      %v937 = vunpack.c.l.b16 %v839
      %v938 = vunpack.c.h.b16 %v839
      %v939 = vunpack.c.l.b16 %v840
      %v940 = vunpack.c.h.b16 %v840
      %v941 = vunpack.c.l.b16 %v841
      %v942 = vunpack.c.h.b16 %v841
      %v943 = vpack.c.b16 %v883, %v879
      %v944 = vpack.c.b16 %v884, %v880
      %v945 = vpack.c.b16 %v885, %v881
      %v946 = vpack.c.b16 %v886, %v882
      %v947 = vpack.c.b16 %v891, %v887
      %v948 = vpack.c.b16 %v892, %v888
      %v949 = vpack.c.b16 %v893, %v889
      %v950 = vpack.c.b16 %v894, %v890
      %v951 = vpack.c.b16 %v899, %v895
      %v952 = vpack.c.b16 %v900, %v896
      %v953 = vpack.c.b16 %v901, %v897
      %v954 = vpack.c.b16 %v902, %v898
      %v955 = vpack.c.b16 %v907, %v903
      %v956 = vpack.c.b16 %v908, %v904
      %v957 = vpack.c.b16 %v909, %v905
      %v958 = vpack.c.b16 %v910, %v906
      %v959 = vpack.c.b16 %v915, %v911
      %v960 = vpack.c.b16 %v916, %v912
      %v961 = vpack.c.b16 %v917, %v913
      %v962 = vpack.c.b16 %v918, %v914
      %v963 = vpack.c.b16 %v923, %v919
      %v964 = vpack.c.b16 %v924, %v920
      %v965 = vpack.c.b16 %v925, %v921
      %v966 = vpack.c.b16 %v926, %v922
      %v967 = vpack.c.b16 %v931, %v927
      %v968 = vpack.c.b16 %v932, %v928
      %v969 = vpack.c.b16 %v933, %v929
      %v970 = vpack.c.b16 %v934, %v930
      %v971 = vpack.c.b16 %v939, %v935
      %v972 = vpack.c.b16 %v940, %v936
      %v973 = vpack.c.b16 %v941, %v937
      %v974 = vpack.c.b16 %v942, %v938
      %1007 = vmatprep.subr.bf16.mxu0 %v944
      %1008 = vmatpush1.bf16.msra.mxu0 %v943
      %1009 = vmatprep.subr.bf16.mxu0 %v948
      %1010 = vmatpush1.bf16.msra.mxu0 %v947
      %1011 = vmatprep.subr.bf16.mxu0 %v952
      %1012 = vmatpush1.bf16.msra.mxu0 %v951
      %1013 = vmatprep.subr.bf16.mxu0 %v956
      %1014 = vmatpush1.bf16.msra.mxu0 %v955
      %1015 = vmatprep.subr.bf16.mxu0 %v960
      %1016 = vmatpush1.bf16.msra.mxu0 %v959
      %1017 = vmatprep.subr.bf16.mxu0 %v964
      %1018 = vmatpush1.bf16.msra.mxu0 %v963
      %1019 = vmatprep.subr.bf16.mxu0 %v968
      %1020 = vmatpush1.bf16.msra.mxu0 %v967
      %1021 = vmatprep.subr.bf16.mxu0 %v972
      %1022 = vmatpush1.bf16.msra.mxu0 %v971
      %1023 = vmatprep.subr.bf16.mxu0 0
      %1024 = vmatpush1.bf16.msra.mxu0 0
      %1025 = vmatprep.subr.bf16.mxu0 0
      %1026 = vmatpush1.bf16.msra.mxu0 0
      %1027 = vmatprep.subr.bf16.mxu0 0
      %1028 = vmatpush1.bf16.msra.mxu0 0
      %1029 = vmatprep.subr.bf16.mxu0 0
      %1030 = vmatpush1.bf16.msra.mxu0 0
      %1031 = vmatprep.subr.bf16.mxu0 0
      %1032 = vmatpush1.bf16.msra.mxu0 0
      %1033 = vmatprep.subr.bf16.mxu0 0
      %1034 = vmatpush1.bf16.msra.mxu0 0
      %1035 = vmatprep.subr.bf16.mxu0 0
      %1036 = vmatpush1.bf16.msra.mxu0 0
      %1037 = vmatprep.subr.bf16.mxu0 0
      %1038 = vmatpush1.bf16.msra.mxu0 0
      %1039 = vmatprep.mubr.bf16.mxu0 0
      %1040 = vmatmul.mubr.bf16.gmra.mrb[0].mxu0 %v845
      %v1041 = vpop.f32.mrb[0].mxu0
      %v1042 = vadd.f32 0.0, %v1041
      %v1043 = vpop.f32.mrb[0].mxu0
      %v1044 = vadd.f32 0.0, %v1043
      %v1045 = vpop.f32.mrb[0].mxu0
      %v1046 = vadd.f32 0.0, %v1045
      %v1047 = vpop.f32.mrb[0].mxu0
      %v1048 = vadd.f32 0.0, %v1047
      %1049 = vdwg.mxu0
      %1050 = vmatprep.subr.bf16.mxu0 %v946
      %1051 = vmatpush1.bf16.msra.mxu0 %v945
      %1052 = vmatprep.subr.bf16.mxu0 %v950
      %1053 = vmatpush1.bf16.msra.mxu0 %v949
      %1054 = vmatprep.subr.bf16.mxu0 %v954
      %1055 = vmatpush1.bf16.msra.mxu0 %v953
      %1056 = vmatprep.subr.bf16.mxu0 %v958
      %1057 = vmatpush1.bf16.msra.mxu0 %v957
      %1058 = vmatprep.subr.bf16.mxu0 %v962
      %1059 = vmatpush1.bf16.msra.mxu0 %v961
      %1060 = vmatprep.subr.bf16.mxu0 %v966
      %1061 = vmatpush1.bf16.msra.mxu0 %v965
      %1062 = vmatprep.subr.bf16.mxu0 %v970
      %1063 = vmatpush1.bf16.msra.mxu0 %v969
      %1064 = vmatprep.subr.bf16.mxu0 %v974
      %1065 = vmatpush1.bf16.msra.mxu0 %v973
      %1066 = vmatprep.subr.bf16.mxu0 0
      %1067 = vmatpush1.bf16.msra.mxu0 0
      %1068 = vmatprep.subr.bf16.mxu0 0
      %1069 = vmatpush1.bf16.msra.mxu0 0
      %1070 = vmatprep.subr.bf16.mxu0 0
      %1071 = vmatpush1.bf16.msra.mxu0 0
      %1072 = vmatprep.subr.bf16.mxu0 0
      %1073 = vmatpush1.bf16.msra.mxu0 0
      %1074 = vmatprep.subr.bf16.mxu0 0
      %1075 = vmatpush1.bf16.msra.mxu0 0
      %1076 = vmatprep.subr.bf16.mxu0 0
      %1077 = vmatpush1.bf16.msra.mxu0 0
      %1078 = vmatprep.subr.bf16.mxu0 0
      %1079 = vmatpush1.bf16.msra.mxu0 0
      %1080 = vmatprep.subr.bf16.mxu0 0
      %1081 = vmatpush1.bf16.msra.mxu0 0
      %1082 = vmatprep.mubr.bf16.mxu0 0
      %1083 = vmatmul.mubr.bf16.gmra.mrb[0].mxu0 %v845
      %v1084 = vpop.f32.mrb[0].mxu0
      %v1085 = vadd.f32 0.0, %v1084
      %v1086 = vpop.f32.mrb[0].mxu0
      %v1087 = vadd.f32 0.0, %v1086
      %v1088 = vpop.f32.mrb[0].mxu0
      %v1089 = vadd.f32 0.0, %v1088
      %v1090 = vpop.f32.mrb[0].mxu0
      %v1091 = vadd.f32 0.0, %v1090
      %1092 = vdwg.mxu0
      %v1093 = vadd.f32 %v758, %v1042
      %v1094 = vadd.f32 %v760, %v1044
      %v1095 = vadd.f32 %v801, %v1085
      %v1096 = vadd.f32 %v803, %v1087
      %v1097 = vadd.f32 %v762, %v1046
      %v1098 = vadd.f32 %v764, %v1048
      %v1099 = vadd.f32 %v805, %v1089
      %v1100 = vadd.f32 %v807, %v1091
      %v1101 = vld [vmem:[%s2] sm:$0xf]
      %v1103 = vlaneseq
      %v1104 = vshrl.u32 %v1103, 7
      %v1105 = vsub.s32 0, %v1104
      %v1106 = vrot.slane %v1101, %v1105
      %v1107 = vlaneseq
      %v1108 = vshrl.u32 %v1107, 7
      %v1109 = vsub.s32 1, %v1108
      %v1110 = vrot.slane %v1101, %v1109
      %v1111 = vlaneseq
      %v1112 = vshrl.u32 %v1111, 7
      %v1113 = vsub.s32 2, %v1112
      %v1114 = vrot.slane %v1101, %v1113
      %v1115 = vlaneseq
      %v1116 = vshrl.u32 %v1115, 7
      %v1117 = vsub.s32 3, %v1116
      %v1118 = vrot.slane %v1101, %v1117
      %v1123 = vadd.f32 %v1093, %v1106
      %v1124 = vadd.f32 %v1094, %v1110
      %v1125 = vadd.f32 %v1095, %v1114
      %v1126 = vadd.f32 %v1096, %v1118
      %v1127 = vadd.f32 %v1097, %v1106
      %v1128 = vadd.f32 %v1098, %v1110
      %v1129 = vadd.f32 %v1099, %v1114
      %v1130 = vadd.f32 %v1100, %v1118
      %v1131 = vmax.f32 %v1123, 0.0
      %v1132 = vmax.f32 %v1124, 0.0
      %v1133 = vmax.f32 %v1125, 0.0
      %v1134 = vmax.f32 %v1126, 0.0
      %v1135 = vmax.f32 %v1127, 0.0
      %v1136 = vmax.f32 %v1128, 0.0
      %v1137 = vmax.f32 %v1129, 0.0
      %v1138 = vmax.f32 %v1130, 0.0
      %v1139 = vpack.c.bf16 %v1135, %v1131
      %v1140 = vpack.c.bf16 %v1136, %v1132
      %v1141 = vpack.c.bf16 %v1137, %v1133
      %v1142 = vpack.c.bf16 %v1138, %v1134
      %v1143 = vld [vmem:[%s3] sm:$0xf]
      %v1144 = vld [vmem:[%s3 + $0x4] sm:$0xf]
      %v1145 = vld [vmem:[%s3 + $0x8] sm:$0xf]
      %v1146 = vld [vmem:[%s3 + $0xc] sm:$0xf]
      %v1147 = vld [vmem:[%s3 + $0x10] sm:$0xf]
      %v1148 = vld [vmem:[%s3 + $0x14] sm:$0xf]
      %v1149 = vld [vmem:[%s3 + $0x18] sm:$0xf]
      %v1150 = vld [vmem:[%s3 + $0x1c] sm:$0xf]
      %v1151 = vld [vmem:[%s3 + $0x20] sm:$0xf]
      %v1152 = vld [vmem:[%s3 + $0x24] sm:$0xf]
      %v1153 = vld [vmem:[%s3 + $0x28] sm:$0xf]
      %v1154 = vld [vmem:[%s3 + $0x2c] sm:$0xf]
      %v1155 = vld [vmem:[%s3 + $0x30] sm:$0xf]
      %v1156 = vld [vmem:[%s3 + $0x34] sm:$0xf]
      %v1157 = vld [vmem:[%s3 + $0x38] sm:$0xf]
      %v1158 = vld [vmem:[%s3 + $0x3c] sm:$0xf]
      %v1159 = vld [vmem:[%s3 + $0x40] sm:$0xf]
      %v1160 = vld [vmem:[%s3 + $0x44] sm:$0xf]
      %v1161 = vld [vmem:[%s3 + $0x48] sm:$0xf]
      %v1162 = vld [vmem:[%s3 + $0x4c] sm:$0xf]
      %v1163 = vld [vmem:[%s3 + $0x50] sm:$0xf]
      %v1164 = vld [vmem:[%s3 + $0x54] sm:$0xf]
      %v1165 = vld [vmem:[%s3 + $0x58] sm:$0xf]
      %v1166 = vld [vmem:[%s3 + $0x5c] sm:$0xf]
      %v1167 = vld [vmem:[%s3 + $0x60] sm:$0xf]
      %v1168 = vld [vmem:[%s3 + $0x64] sm:$0xf]
      %v1169 = vld [vmem:[%s3 + $0x68] sm:$0xf]
      %v1170 = vld [vmem:[%s3 + $0x6c] sm:$0xf]
      %v1171 = vld [vmem:[%s3 + $0x70] sm:$0xf]
      %v1172 = vld [vmem:[%s3 + $0x74] sm:$0xf]
      %v1173 = vld [vmem:[%s3 + $0x78] sm:$0xf]
      %v1174 = vld [vmem:[%s3 + $0x7c] sm:$0xf]
      %v1175 = vld [vmem:[%s3 + $0x80] sm:$0xf]
      %v1176 = vld [vmem:[%s3 + $0x84] sm:$0xf]
      %v1177 = vld [vmem:[%s3 + $0x88] sm:$0xf]
      %v1178 = vld [vmem:[%s3 + $0x8c] sm:$0xf]
      %v1179 = vld [vmem:[%s3 + $0x90] sm:$0xf]
      %v1180 = vld [vmem:[%s3 + $0x94] sm:$0xf]
      %v1181 = vld [vmem:[%s3 + $0x98] sm:$0xf]
      %v1182 = vld [vmem:[%s3 + $0x9c] sm:$0xf]
      %v1183 = vld [vmem:[%s3 + $0xa0] sm:$0xf]
      %v1184 = vld [vmem:[%s3 + $0xa4] sm:$0xf]
      %v1185 = vld [vmem:[%s3 + $0xa8] sm:$0xf]
      %v1186 = vld [vmem:[%s3 + $0xac] sm:$0xf]
      %v1187 = vld [vmem:[%s3 + $0xb0] sm:$0xf]
      %v1188 = vld [vmem:[%s3 + $0xb4] sm:$0xf]
      %v1189 = vld [vmem:[%s3 + $0xb8] sm:$0xf]
      %v1190 = vld [vmem:[%s3 + $0xbc] sm:$0xf]
      %v1191 = vld [vmem:[%s3 + $0xc0] sm:$0xf]
      %v1192 = vld [vmem:[%s3 + $0xc4] sm:$0xf]
      %v1193 = vld [vmem:[%s3 + $0xc8] sm:$0xf]
      %v1194 = vld [vmem:[%s3 + $0xcc] sm:$0xf]
      %v1195 = vld [vmem:[%s3 + $0xd0] sm:$0xf]
      %v1196 = vld [vmem:[%s3 + $0xd4] sm:$0xf]
      %v1197 = vld [vmem:[%s3 + $0xd8] sm:$0xf]
      %v1198 = vld [vmem:[%s3 + $0xdc] sm:$0xf]
      %v1199 = vld [vmem:[%s3 + $0xe0] sm:$0xf]
      %v1200 = vld [vmem:[%s3 + $0xe4] sm:$0xf]
      %v1201 = vld [vmem:[%s3 + $0xe8] sm:$0xf]
      %v1202 = vld [vmem:[%s3 + $0xec] sm:$0xf]
      %v1203 = vld [vmem:[%s3 + $0xf0] sm:$0xf]
      %v1204 = vld [vmem:[%s3 + $0xf4] sm:$0xf]
      %v1205 = vld [vmem:[%s3 + $0xf8] sm:$0xf]
      %v1206 = vld [vmem:[%s3 + $0xfc] sm:$0xf]
      %v1207 = vld [vmem:[%s4] sm:$0x1]
      %v1209 = vlaneseq
      %v1210 = vshrl.u32 %v1209, 7
      %v1211 = vsub.s32 0, %v1210
      %v1212 = vrot.slane %v1207, %v1211
      %v1278 = vunpack.c.l.b16 %v1143
      %v1279 = vunpack.c.l.b16 %v1144
      %v1280 = vunpack.c.l.b16 %v1145
      %v1281 = vunpack.c.l.b16 %v1146
      %v1282 = vunpack.c.l.b16 %v1147
      %v1283 = vunpack.c.l.b16 %v1148
      %v1284 = vunpack.c.l.b16 %v1149
      %v1285 = vunpack.c.l.b16 %v1150
      %v1286 = vunpack.c.l.b16 %v1151
      %v1287 = vunpack.c.l.b16 %v1152
      %v1288 = vunpack.c.l.b16 %v1153
      %v1289 = vunpack.c.l.b16 %v1154
      %v1290 = vunpack.c.l.b16 %v1155
      %v1291 = vunpack.c.l.b16 %v1156
      %v1292 = vunpack.c.l.b16 %v1157
      %v1293 = vunpack.c.l.b16 %v1158
      %v1294 = vunpack.c.l.b16 %v1159
      %v1295 = vunpack.c.l.b16 %v1160
      %v1296 = vunpack.c.l.b16 %v1161
      %v1297 = vunpack.c.l.b16 %v1162
      %v1298 = vunpack.c.l.b16 %v1163
      %v1299 = vunpack.c.l.b16 %v1164
      %v1300 = vunpack.c.l.b16 %v1165
      %v1301 = vunpack.c.l.b16 %v1166
      %v1302 = vunpack.c.l.b16 %v1167
      %v1303 = vunpack.c.l.b16 %v1168
      %v1304 = vunpack.c.l.b16 %v1169
      %v1305 = vunpack.c.l.b16 %v1170
      %v1306 = vunpack.c.l.b16 %v1171
      %v1307 = vunpack.c.l.b16 %v1172
      %v1308 = vunpack.c.l.b16 %v1173
      %v1309 = vunpack.c.l.b16 %v1174
      %v1310 = vunpack.c.l.b16 %v1175
      %v1311 = vunpack.c.l.b16 %v1176
      %v1312 = vunpack.c.l.b16 %v1177
      %v1313 = vunpack.c.l.b16 %v1178
      %v1314 = vunpack.c.l.b16 %v1179
      %v1315 = vunpack.c.l.b16 %v1180
      %v1316 = vunpack.c.l.b16 %v1181
      %v1317 = vunpack.c.l.b16 %v1182
      %v1318 = vunpack.c.l.b16 %v1183
      %v1319 = vunpack.c.l.b16 %v1184
      %v1320 = vunpack.c.l.b16 %v1185
      %v1321 = vunpack.c.l.b16 %v1186
      %v1322 = vunpack.c.l.b16 %v1187
      %v1323 = vunpack.c.l.b16 %v1188
      %v1324 = vunpack.c.l.b16 %v1189
      %v1325 = vunpack.c.l.b16 %v1190
      %v1326 = vunpack.c.l.b16 %v1191
      %v1327 = vunpack.c.l.b16 %v1192
      %v1328 = vunpack.c.l.b16 %v1193
      %v1329 = vunpack.c.l.b16 %v1194
      %v1330 = vunpack.c.l.b16 %v1195
      %v1331 = vunpack.c.l.b16 %v1196
      %v1332 = vunpack.c.l.b16 %v1197
      %v1333 = vunpack.c.l.b16 %v1198
      %v1334 = vunpack.c.l.b16 %v1199
      %v1335 = vunpack.c.l.b16 %v1200
      %v1336 = vunpack.c.l.b16 %v1201
      %v1337 = vunpack.c.l.b16 %v1202
      %v1338 = vunpack.c.l.b16 %v1203
      %v1339 = vunpack.c.l.b16 %v1204
      %v1340 = vunpack.c.l.b16 %v1205
      %v1341 = vunpack.c.l.b16 %v1206
      %v1342 = vpack.c.b16 %v1279, %v1278
      %v1343 = vpack.c.b16 %v1281, %v1280
      %v1344 = vpack.c.b16 %v1283, %v1282
      %v1345 = vpack.c.b16 %v1285, %v1284
      %v1346 = vpack.c.b16 %v1287, %v1286
      %v1347 = vpack.c.b16 %v1289, %v1288
      %v1348 = vpack.c.b16 %v1291, %v1290
      %v1349 = vpack.c.b16 %v1293, %v1292
      %v1350 = vpack.c.b16 %v1295, %v1294
      %v1351 = vpack.c.b16 %v1297, %v1296
      %v1352 = vpack.c.b16 %v1299, %v1298
      %v1353 = vpack.c.b16 %v1301, %v1300
      %v1354 = vpack.c.b16 %v1303, %v1302
      %v1355 = vpack.c.b16 %v1305, %v1304
      %v1356 = vpack.c.b16 %v1307, %v1306
      %v1357 = vpack.c.b16 %v1309, %v1308
      %v1358 = vpack.c.b16 %v1311, %v1310
      %v1359 = vpack.c.b16 %v1313, %v1312
      %v1360 = vpack.c.b16 %v1315, %v1314
      %v1361 = vpack.c.b16 %v1317, %v1316
      %v1362 = vpack.c.b16 %v1319, %v1318
      %v1363 = vpack.c.b16 %v1321, %v1320
      %v1364 = vpack.c.b16 %v1323, %v1322
      %v1365 = vpack.c.b16 %v1325, %v1324
      %v1366 = vpack.c.b16 %v1327, %v1326
      %v1367 = vpack.c.b16 %v1329, %v1328
      %v1368 = vpack.c.b16 %v1331, %v1330
      %v1369 = vpack.c.b16 %v1333, %v1332
      %v1370 = vpack.c.b16 %v1335, %v1334
      %v1371 = vpack.c.b16 %v1337, %v1336
      %v1372 = vpack.c.b16 %v1339, %v1338
      %v1373 = vpack.c.b16 %v1341, %v1340
      %1406 = vmatprep.subr.bf16.mxu0 0
      %1407 = vmatpush1.bf16.msra.mxu0 %v1342
      %1408 = vmatprep.subr.bf16.mxu0 0
      %1409 = vmatpush1.bf16.msra.mxu0 %v1343
      %1410 = vmatprep.subr.bf16.mxu0 0
      %1411 = vmatpush1.bf16.msra.mxu0 %v1344
      %1412 = vmatprep.subr.bf16.mxu0 0
      %1413 = vmatpush1.bf16.msra.mxu0 %v1345
      %1414 = vmatprep.subr.bf16.mxu0 0
      %1415 = vmatpush1.bf16.msra.mxu0 %v1346
      %1416 = vmatprep.subr.bf16.mxu0 0
      %1417 = vmatpush1.bf16.msra.mxu0 %v1347
      %1418 = vmatprep.subr.bf16.mxu0 0
      %1419 = vmatpush1.bf16.msra.mxu0 %v1348
      %1420 = vmatprep.subr.bf16.mxu0 0
      %1421 = vmatpush1.bf16.msra.mxu0 %v1349
      %1422 = vmatprep.subr.bf16.mxu0 0
      %1423 = vmatpush1.bf16.msra.mxu0 %v1350
      %1424 = vmatprep.subr.bf16.mxu0 0
      %1425 = vmatpush1.bf16.msra.mxu0 %v1351
      %1426 = vmatprep.subr.bf16.mxu0 0
      %1427 = vmatpush1.bf16.msra.mxu0 %v1352
      %1428 = vmatprep.subr.bf16.mxu0 0
      %1429 = vmatpush1.bf16.msra.mxu0 %v1353
      %1430 = vmatprep.subr.bf16.mxu0 0
      %1431 = vmatpush1.bf16.msra.mxu0 %v1354
      %1432 = vmatprep.subr.bf16.mxu0 0
      %1433 = vmatpush1.bf16.msra.mxu0 %v1355
      %1434 = vmatprep.subr.bf16.mxu0 0
      %1435 = vmatpush1.bf16.msra.mxu0 %v1356
      %1436 = vmatprep.subr.bf16.mxu0 0
      %1437 = vmatpush1.bf16.msra.mxu0 %v1357
      %1438 = vmatprep.mubr.bf16.mxu0 %v1140
      %1439 = vmatmul.mubr.bf16.gmra.mrb[0].mxu0 %v1139
      %v1440 = vpop.f32.mrb[0].mxu0
      %v1441 = vadd.f32 %v1212, %v1440
      %v1442 = vpop.f32.mrb[0].mxu0
      %v1443 = vpop.f32.mrb[0].mxu0
      %v1444 = vadd.f32 %v1212, %v1443
      %v1445 = vpop.f32.mrb[0].mxu0
      %1446 = vdwg.mxu0
      %1447 = vmatprep.subr.bf16.mxu0 0
      %1448 = vmatpush1.bf16.msra.mxu0 %v1358
      %1449 = vmatprep.subr.bf16.mxu0 0
      %1450 = vmatpush1.bf16.msra.mxu0 %v1359
      %1451 = vmatprep.subr.bf16.mxu0 0
      %1452 = vmatpush1.bf16.msra.mxu0 %v1360
      %1453 = vmatprep.subr.bf16.mxu0 0
      %1454 = vmatpush1.bf16.msra.mxu0 %v1361
      %1455 = vmatprep.subr.bf16.mxu0 0
      %1456 = vmatpush1.bf16.msra.mxu0 %v1362
      %1457 = vmatprep.subr.bf16.mxu0 0
      %1458 = vmatpush1.bf16.msra.mxu0 %v1363
      %1459 = vmatprep.subr.bf16.mxu0 0
      %1460 = vmatpush1.bf16.msra.mxu0 %v1364
      %1461 = vmatprep.subr.bf16.mxu0 0
      %1462 = vmatpush1.bf16.msra.mxu0 %v1365
      %1463 = vmatprep.subr.bf16.mxu0 0
      %1464 = vmatpush1.bf16.msra.mxu0 %v1366
      %1465 = vmatprep.subr.bf16.mxu0 0
      %1466 = vmatpush1.bf16.msra.mxu0 %v1367
      %1467 = vmatprep.subr.bf16.mxu0 0
      %1468 = vmatpush1.bf16.msra.mxu0 %v1368
      %1469 = vmatprep.subr.bf16.mxu0 0
      %1470 = vmatpush1.bf16.msra.mxu0 %v1369
      %1471 = vmatprep.subr.bf16.mxu0 0
      %1472 = vmatpush1.bf16.msra.mxu0 %v1370
      %1473 = vmatprep.subr.bf16.mxu0 0
      %1474 = vmatpush1.bf16.msra.mxu0 %v1371
      %1475 = vmatprep.subr.bf16.mxu0 0
      %1476 = vmatpush1.bf16.msra.mxu0 %v1372
      %1477 = vmatprep.subr.bf16.mxu0 0
      %1478 = vmatpush1.bf16.msra.mxu0 %v1373
      %1479 = vmatprep.mubr.bf16.mxu0 %v1142
      %1480 = vmatmul.mubr.bf16.gmra.mrb[0].mxu0 %v1141
      %v1481 = vpop.f32.mrb[0].mxu0
      %v1482 = vadd.f32 %v1441, %v1481
      %v1483 = vpop.f32.mrb[0].mxu0
      %v1484 = vpop.f32.mrb[0].mxu0
      %v1485 = vadd.f32 %v1444, %v1484
      %v1486 = vpop.f32.mrb[0].mxu0
      %1487 = vdwg.mxu0
      %1488 = vst [vmem:[%s224] sm:$0xff] %v1482
      %1489 = vst [vmem:[%s224 + $0x8] sm:$0xff] %v1485
      %p1490 = scmp.lt.s32.totalorder %s16, 1
      %s1491 = scalar_select %p1490, %s16, 1
      %s1492 = smul.addr %s1491, 2
      %s1493 = smul.addr %s1492, 8
      %s1494 = scalar_lea.vmem %s5, %s1493
      // Predicated region
      $region41: #{aux_layer_pallas.1} parent=39 // pred_check
        %p1495 = pneg %p144
      $region42: #{aux_layer_pallas.1} parent=39 // pred_check_branch
        %1497 = sbr.rel (%p1495) target = $region44
      $region43: #{aux_layer_pallas.1} parent=39 // pred_region
        _
      $region44: #{aux_layer_pallas.1} parent=39 // pred_fallthru
        _
    $region40: #{aux_layer_pallas.1} parent=5 // pred_fallthru
      _
    %p1498 = scmp.le.s32.totalorder 2, %s11
    // Predicated region
    $region45: #{aux_layer_pallas.1} parent=5 // pred_check
      %p1499 = pneg %p1498
    $region46: #{aux_layer_pallas.1} parent=5 // pred_check_branch
      %1501 = sbr.rel (%p1499) target = $region48
    $region47: #{aux_layer_pallas.1} parent=5 // pred_region
      %s1502 = ssub.s32 %s11, 2
      // Predicated region
      $region49: #{aux_layer_pallas.1} parent=47 // pred_check
        %p1503 = pneg %p150
      $region50: #{aux_layer_pallas.1} parent=47 // pred_check_branch
        %1505 = sbr.rel (%p1503) target = $region52
      $region51: #{aux_layer_pallas.1} parent=47 // pred_region
        %p1506 = scmp.lt.s32.totalorder %s17, 1
        %s1507 = scalar_select %p1506, %s17, 1
        %s1508 = smul.addr %s1507, 2
        %s1509 = smul.addr %s1508, 8
        %s1510 = scalar_lea.vmem %s5, %s1509
      $region52: #{aux_layer_pallas.1} parent=47 // pred_fallthru
        _
    $region48: #{aux_layer_pallas.1} parent=5 // pred_fallthru
      _
  $region6: #{aux_layer_pallas.1} parent=0 // loop_footer
    %s15 = sadd.s32 1, %s11
  $region7: #{aux_layer_pallas.1} parent=0 // loop_footer_branch
    %10 = sbr.rel target = $region3
  $region8: #{aux_layer_pallas.1} parent=0 // loop_exit
    _

</llo_original>
